<compile_context>
chip_gen: v6e
topology: v6e:2x2x1
jax: 0.10.0
libtpu: 0.0.40
codegen_flags: <defaults>
</compile_context>

<pallas_src>
import numpy as np
import jax
import jax.numpy as jnp
from jax.experimental import pallas as pl
from jax.experimental.pallas import tpu as pltpu

LANE = 128      # vreg lane width (last dim)
SUBLANE = 8     # vreg sublane count (second-to-last dim)


def _round_up(v, m):
    return ((v + m - 1) // m) * m


def _nbytes(a):
    return int(np.prod(a.shape)) * jnp.dtype(a.dtype).itemsize


# --------------------------------------------------------------------------- kernel
def gnn_forward_kernel(x_ref, a_ref, pool_ref,
                       w1_ref, b1_ref, wlin_ref, blin_ref,
                       w2_ref, b2_ref, wfc_ref, bfc_ref,
                       out_ref):
    f32 = jnp.float32
    bf16 = jnp.bfloat16

    x = x_ref[0]          # (M, d_in)  f32   M = graphs_per_step * n_pad node rows
    A = a_ref[0]          # (M, M)     f32   block-diagonal, row-normalized adjacency
    P = pool_ref[...]     # (GB, M)    f32   per-graph mean-pool weights (0 on pad rows)

    # --- SAGEConv #1 (fused lin_l / lin_r): [mean_agg(x) | x] @ [wl1; wr1] + bl1 ---
    agg = jnp.dot(A, x, preferred_element_type=f32)               # f32 aggregation
    cat = jnp.concatenate([agg, x], axis=-1).astype(bf16)         # (M, 2*d_in)
    h = jnp.dot(cat, w1_ref[...], preferred_element_type=f32) + b1_ref[...]
    h = jnp.maximum(h, 0.0)              # ReLU in f32; dropout = identity in eval mode

    # --- hidden Linear + ReLU ---
    h = jnp.dot(h.astype(bf16), wlin_ref[...], preferred_element_type=f32) + blin_ref[...]
    h = jnp.maximum(h, 0.0)

    # --- SAGEConv #2 (fused) + ReLU ---
    agg2 = jnp.dot(A, h, preferred_element_type=f32)
    cat2 = jnp.concatenate([agg2, h], axis=-1).astype(bf16)       # (M, 2*d_h)
    h = jnp.dot(cat2, w2_ref[...], preferred_element_type=f32) + b2_ref[...]
    h = jnp.maximum(h, 0.0)                                       # (M, d_h) f32

    # --- global_mean_pool as one small matmul: (GB, M) @ (M, d_h) -> (GB, d_h) ---
    pooled = jnp.dot(P, h, preferred_element_type=f32)

    # --- fc (kept fully in f32; tiny) -> lane/sublane-dense (GB, 128) store ---
    out_ref[0] = jnp.dot(pooled, wfc_ref[...], preferred_element_type=f32) + bfc_ref[...]


# --------------------------------------------------------------------------- wrappers
def prepare_params(params):
    """One-time weight prep (hoisted out of the per-call path):
       fuse [lin_l; lin_r] per SAGEConv, cast matmul weights to bf16, and pad only
       the fc weight/bias out to 128 lanes for a lane-dense output store."""
    f32, bf16 = jnp.float32, jnp.bfloat16
    d_h = params["wl1"].shape[1]
    d_out = params["wfc"].shape[1]
    d_out_p = _round_up(d_out, LANE)

    wfc = jnp.zeros((d_h, d_out_p), f32).at[:, :d_out].set(params["wfc"].astype(f32))
    bfc = jnp.zeros((1, d_out_p), f32).at[:, :d_out].set(params["bfc"].astype(f32))
    return {
        "w1": jnp.concatenate([params["wl1"], params["wr1"]], axis=0).astype(bf16),
        "b1": params["bl1"].astype(f32),
        "wlin": params["wlin"].astype(bf16),
        "blin": params["blin"].astype(f32),
        "w2": jnp.concatenate([params["wl2"], params["wr2"]], axis=0).astype(bf16),
        "b2": params["bl2"].astype(f32),
        "wfc": wfc,
        "bfc": bfc,
        "d_out": int(d_out),
    }


def static_gnn_forward(x_blocks, a_blocks, prepared, graphs_per_step=None):
    """x_blocks: [G, n, input_dim] f32 node features per graph.
       a_blocks: [G, n, n] f32 row-normalized in-adjacency per graph
                 (mean aggregation == A_g @ x_g).  Batched graphs never share edges,
       so within a grid step they form one block-diagonal adjacency tile."""
    G, n, d_in = x_blocks.shape
    d_h = prepared["wlin"].shape[0]
    d_out = prepared["d_out"]
    d_out_p = prepared["wfc"].shape[1]
    f32 = jnp.float32

    n_pad = _round_up(n, SUBLANE)

    # Pick graphs-per-step so M = GB*n_pad ~ 256 rows (fills v6e/v7x's 256x256 MXU;
    # on v5e 128-row tiles already map cleanly, pass graphs_per_step explicitly if
    # VMEM headroom matters more).  Keep >= 2 grid steps so the "parallel" grid axis
    # can shard across v7x's 2 TensorCores.
    if graphs_per_step is None:
        gb = max(1, min(G, 256 // n_pad))
        while gb > 1 and pl.cdiv(G, gb) < 2:
            gb //= 2
    else:
        gb = max(1, min(G, graphs_per_step))
    gs = pl.cdiv(G, gb)          # grid steps
    g_pad = gs * gb
    m = gb * n_pad               # node rows per step

    # --- node features: (GS, M, d_in) f32, NO lane padding of the feature dim ---
    xg = jnp.pad(x_blocks.astype(f32),
                 ((0, g_pad - G), (0, n_pad - n), (0, 0)))          # (g_pad, n_pad, d_in)
    x_p = xg.reshape(gs, m, d_in)

    # --- block-diagonal adjacency per step: (GS, M, M) f32 ---
    ag = jnp.pad(a_blocks.astype(f32),
                 ((0, g_pad - G), (0, n_pad - n), (0, n_pad - n)))  # (g_pad, n_pad, n_pad)
    ag = ag.reshape(gs, gb, n_pad, n_pad)
    eye_gb = jnp.eye(gb, dtype=f32)
    a_bd = jnp.einsum("sgpq,gh->sgphq", ag, eye_gb).reshape(gs, m, m)

    # --- per-graph mean-pool matrix (shared by all steps): (GB, M) f32 ---
    pool_row = jnp.zeros((n_pad,), f32).at[:n].set(1.0 / n)         # 0 on padded nodes
    pool = jnp.einsum("gh,p->ghp", eye_gb, pool_row).reshape(gb, m)

    weight_keys = ("w1", "b1", "wlin", "blin", "w2", "b2", "wfc", "bfc")

    # --- VMEM budget from the actual per-step footprint (headroom, v7x-safe) ---
    step_bytes = 2 * (m * max(d_in, LANE) * 4        # x (lane-tiled), double-buffered
                      + m * m * 4                    # block-diag A, double-buffered
                      + gb * d_out_p * 4)            # output, double-buffered
    const_bytes = 2 * (sum(_nbytes(prepared[k]) for k in weight_keys) + _nbytes(pool))
    scratch_bytes = 8 * m * max(2 * d_h, LANE) * 4   # in-kernel intermediates (agg/cat/h)
    vmem_limit = int(min(48 * 1024 * 1024,
                         max(8 * 1024 * 1024,
                             2 * (step_bytes + const_bytes + scratch_bytes))))

    per_step = lambda g: (g, 0, 0)
    const2 = lambda g: (0, 0)     # weights / pool stay VMEM-resident across the grid

    out = pl.pallas_call(
        gnn_forward_kernel,
        out_shape=jax.ShapeDtypeStruct((gs, gb, d_out_p), f32),
        grid=(gs,),
        in_specs=[
            pl.BlockSpec((1, m, d_in), per_step),                    # x (GB graphs)
            pl.BlockSpec((1, m, m), per_step),                       # block-diag A
            pl.BlockSpec(pool.shape, const2),                        # pooling matrix
            pl.BlockSpec(prepared["w1"].shape, const2),              # [wl1; wr1]
            pl.BlockSpec(prepared["b1"].shape, const2),              # bl1
            pl.BlockSpec(prepared["wlin"].shape, const2),            # wlin
            pl.BlockSpec(prepared["blin"].shape, const2),            # blin
            pl.BlockSpec(prepared["w2"].shape, const2),              # [wl2; wr2]
            pl.BlockSpec(prepared["b2"].shape, const2),              # bl2
            pl.BlockSpec(prepared["wfc"].shape, const2),             # wfc (128-lane)
            pl.BlockSpec(prepared["bfc"].shape, const2),             # bfc (128-lane)
        ],
        out_specs=pl.BlockSpec((1, gb, d_out_p), per_step),
        compiler_params=pltpu.CompilerParams(
            dimension_semantics=("parallel",),     # graph-group axis shards across TCs
            vmem_limit_bytes=vmem_limit,
        ),
    )(x_p, a_bd, pool,
      prepared["w1"], prepared["b1"], prepared["wlin"], prepared["blin"],
      prepared["w2"], prepared["b2"], prepared["wfc"], prepared["bfc"])

    # Slice back to the valid (num_graphs, output_dim) result.
    return out.reshape(g_pad, d_out_p)[:G, :d_out]


# --------------------------------------------------------------------------- reference
def reference_forward(x_blocks, a_blocks, p):
    """Pure-JAX f32 reference of the same forward pass (sanity check)."""
    def one(xg, Ag):
        h = jnp.maximum(Ag @ xg @ p["wl1"] + p["bl1"] + xg @ p["wr1"], 0.0)
        h = jnp.maximum(h @ p["wlin"] + p["blin"], 0.0)
        h = jnp.maximum(Ag @ h @ p["wl2"] + p["bl2"] + h @ p["wr2"], 0.0)
        pooled = jnp.mean(h, axis=0)
        return pooled @ p["wfc"] + p["bfc"][0]
    return jax.vmap(one)(x_blocks, a_blocks)


def build_graph_blocks(num_graphs, nodes_per_graph):
    """Deterministic bidirectional ring per graph; per-graph row-normalized blocks."""
    Ag = np.zeros((nodes_per_graph, nodes_per_graph), dtype=np.float32)
    for j in range(nodes_per_graph):
        nxt = (j + 1) % nodes_per_graph
        Ag[nxt, j] = 1.0
        Ag[j, nxt] = 1.0
    deg = Ag.sum(axis=1, keepdims=True)
    deg = np.where(deg > 0, deg, 1.0)
    Ag = Ag / deg                                 # row-normalized -> mean aggregation
    blocks = np.broadcast_to(Ag, (num_graphs, nodes_per_graph, nodes_per_graph)).copy()
    return jnp.asarray(blocks)


def init_params(key, input_dim, hidden_dim, output_dim):
    ks = jax.random.split(key, 10)

    def w(k, fan_in, fan_out):
        scale = 1.0 / np.sqrt(fan_in)
        return jax.random.uniform(k, (fan_in, fan_out), jnp.float32, -scale, scale)

    def b(k, fan_in, dim):
        scale = 1.0 / np.sqrt(fan_in)
        return jax.random.uniform(k, (1, dim), jnp.float32, -scale, scale)

    return {
        # SAGEConv(input_dim, hidden_dim): lin_l (with bias), lin_r (no bias)
        "wl1": w(ks[0], input_dim, hidden_dim),
        "bl1": b(ks[1], input_dim, hidden_dim),
        "wr1": w(ks[2], input_dim, hidden_dim),
        # Linear(hidden, hidden)
        "wlin": w(ks[3], hidden_dim, hidden_dim),
        "blin": b(ks[4], hidden_dim, hidden_dim),
        # SAGEConv(hidden, hidden)
        "wl2": w(ks[5], hidden_dim, hidden_dim),
        "bl2": b(ks[6], hidden_dim, hidden_dim),
        "wr2": w(ks[7], hidden_dim, hidden_dim),
        # fc: Linear(hidden, output_dim)
        "wfc": w(ks[8], hidden_dim, output_dim),
        "bfc": b(ks[9], hidden_dim, output_dim),
    }


if __name__ == "__main__":
    input_dim, hidden_dim, output_dim = 8, 32, 4
    num_graphs, nodes_per_graph = 32, 16     # 32 small graphs -> 2 steps of 16 graphs (M=256)

    key = jax.random.PRNGKey(0)
    k_x, k_p = jax.random.split(key)

    x_blocks = jax.random.normal(
        k_x, (num_graphs, nodes_per_graph, input_dim), dtype=jnp.float32)
    a_blocks = build_graph_blocks(num_graphs, nodes_per_graph)
    params = init_params(k_p, input_dim, hidden_dim, output_dim)
    prepared = prepare_params(params)        # one-time weight fusion / fc lane padding

    out = static_gnn_forward(x_blocks, a_blocks, prepared)
    out = jax.block_until_ready(out)

    ref = reference_forward(x_blocks, a_blocks, params)
    # bf16 weight-matmul inputs, f32 everywhere else -> modest tolerance vs f32 ref.
    np.testing.assert_allclose(np.asarray(out), np.asarray(ref), rtol=2e-2, atol=2e-2)
    assert out.shape == (num_graphs, output_dim)

    print("KERNEL_OK")
</pallas_src>

<mosaic_0001>
module attributes {stable_mosaic.version = 11 : i64} {
  func.func @gnn_forward_kernel(%arg0: i32, %arg1: memref<1x256x8xf32, #tpu.memory_space<vmem>>, %arg2: memref<1x256x256xf32, #tpu.memory_space<vmem>>, %arg3: memref<16x256xf32, #tpu.memory_space<vmem>>, %arg4: memref<16x32xbf16, #tpu.memory_space<vmem>>, %arg5: memref<1x32xf32, #tpu.memory_space<vmem>>, %arg6: memref<32x32xbf16, #tpu.memory_space<vmem>>, %arg7: memref<1x32xf32, #tpu.memory_space<vmem>>, %arg8: memref<64x32xbf16, #tpu.memory_space<vmem>>, %arg9: memref<1x32xf32, #tpu.memory_space<vmem>>, %arg10: memref<32x128xf32, #tpu.memory_space<vmem>>, %arg11: memref<1x128xf32, #tpu.memory_space<vmem>>, %arg12: memref<1x16x128xf32, #tpu.memory_space<vmem>>) attributes {dimension_semantics = [#tpu.dimension_semantics<parallel>], iteration_bounds = array<i64: 2>, scalar_prefetch = 0 : i64, scratch_operands = 0 : i64, tpu.core_type = #tpu.core_type<tc>, window_params = [{transform_indices = @transform_0, window_bounds = array<i64: 1, 256, 8>}, {transform_indices = @transform_1, window_bounds = array<i64: 1, 256, 256>}, {pipeline_mode = #tpu.pipeline_mode<synchronous>, transform_indices = @transform_2, window_bounds = array<i64: 16, 256>}, {pipeline_mode = #tpu.pipeline_mode<synchronous>, transform_indices = @transform_3, window_bounds = array<i64: 16, 32>}, {pipeline_mode = #tpu.pipeline_mode<synchronous>, transform_indices = @transform_4, window_bounds = array<i64: 1, 32>}, {pipeline_mode = #tpu.pipeline_mode<synchronous>, transform_indices = @transform_5, window_bounds = array<i64: 32, 32>}, {pipeline_mode = #tpu.pipeline_mode<synchronous>, transform_indices = @transform_6, window_bounds = array<i64: 1, 32>}, {pipeline_mode = #tpu.pipeline_mode<synchronous>, transform_indices = @transform_7, window_bounds = array<i64: 64, 32>}, {pipeline_mode = #tpu.pipeline_mode<synchronous>, transform_indices = @transform_8, window_bounds = array<i64: 1, 32>}, {pipeline_mode = #tpu.pipeline_mode<synchronous>, transform_indices = @transform_9, window_bounds = array<i64: 32, 128>}, {pipeline_mode = #tpu.pipeline_mode<synchronous>, transform_indices = @transform_10, window_bounds = array<i64: 1, 128>}, {transform_indices = @transform_11, window_bounds = array<i64: 1, 16, 128>}]} {
    %c0 = arith.constant 0 : index
    %c0_0 = arith.constant 0 : index
    %c0_1 = arith.constant 0 : index
    %0 = vector.load %arg1[%c0, %c0_0, %c0_1] : memref<1x256x8xf32, #tpu.memory_space<vmem>>, vector<1x256x8xf32>
    %1 = vector.shape_cast %0 : vector<1x256x8xf32> to vector<256x8xf32>
    %c0_2 = arith.constant 0 : index
    %c0_3 = arith.constant 0 : index
    %c0_4 = arith.constant 0 : index
    %2 = vector.load %arg2[%c0_2, %c0_3, %c0_4] : memref<1x256x256xf32, #tpu.memory_space<vmem>>, vector<1x256x256xf32>
    %3 = vector.shape_cast %2 : vector<1x256x256xf32> to vector<256x256xf32>
    %c0_5 = arith.constant 0 : index
    %c0_6 = arith.constant 0 : index
    %4 = vector.load %arg3[%c0_5, %c0_6] : memref<16x256xf32, #tpu.memory_space<vmem>>, vector<16x256xf32>
    %cst = arith.constant dense<0.000000e+00> : vector<256x8xf32>
    %5 = tpu.matmul %3, %1, %cst {dimension_numbers = #tpu.dot_dimension_numbers<[1], [0], [0], [1], [0, 0, 1, 1], [], []>} : vector<256x256xf32>, vector<256x8xf32>, vector<256x8xf32> -> vector<256x8xf32>
    %6 = tpu.concatenate %5, %1 in 1 : vector<256x8xf32>, vector<256x8xf32> -> vector<256x16xf32>
    %7 = arith.truncf %6 : vector<256x16xf32> to vector<256x16xbf16>
    %c0_7 = arith.constant 0 : index
    %c0_8 = arith.constant 0 : index
    %8 = vector.load %arg4[%c0_7, %c0_8] : memref<16x32xbf16, #tpu.memory_space<vmem>>, vector<16x32xbf16>
    %cst_9 = arith.constant dense<0.000000e+00> : vector<256x32xf32>
    %9 = tpu.matmul %7, %8, %cst_9 {dimension_numbers = #tpu.dot_dimension_numbers<[1], [0], [0], [1], [0, 0, 1, 1], [], []>} : vector<256x16xbf16>, vector<16x32xbf16>, vector<256x32xf32> -> vector<256x32xf32>
    %c0_10 = arith.constant 0 : index
    %c0_11 = arith.constant 0 : index
    %10 = vector.load %arg5[%c0_10, %c0_11] : memref<1x32xf32, #tpu.memory_space<vmem>>, vector<1x32xf32>
    %11 = vector.broadcast %10 : vector<1x32xf32> to vector<256x32xf32>
    %12 = arith.addf %9, %11 : vector<256x32xf32>
    %cst_12 = arith.constant 0.000000e+00 : f32
    %13 = vector.broadcast %cst_12 : f32 to vector<256x32xf32>
    %14 = arith.maximumf %12, %13 : vector<256x32xf32>
    %15 = arith.truncf %14 : vector<256x32xf32> to vector<256x32xbf16>
    %c0_13 = arith.constant 0 : index
    %c0_14 = arith.constant 0 : index
    %16 = vector.load %arg6[%c0_13, %c0_14] : memref<32x32xbf16, #tpu.memory_space<vmem>>, vector<32x32xbf16>
    %cst_15 = arith.constant dense<0.000000e+00> : vector<256x32xf32>
    %17 = tpu.matmul %15, %16, %cst_15 {dimension_numbers = #tpu.dot_dimension_numbers<[1], [0], [0], [1], [0, 0, 1, 1], [], []>} : vector<256x32xbf16>, vector<32x32xbf16>, vector<256x32xf32> -> vector<256x32xf32>
    %c0_16 = arith.constant 0 : index
    %c0_17 = arith.constant 0 : index
    %18 = vector.load %arg7[%c0_16, %c0_17] : memref<1x32xf32, #tpu.memory_space<vmem>>, vector<1x32xf32>
    %19 = vector.broadcast %18 : vector<1x32xf32> to vector<256x32xf32>
    %20 = arith.addf %17, %19 : vector<256x32xf32>
    %cst_18 = arith.constant 0.000000e+00 : f32
    %21 = vector.broadcast %cst_18 : f32 to vector<256x32xf32>
    %22 = arith.maximumf %20, %21 : vector<256x32xf32>
    %cst_19 = arith.constant dense<0.000000e+00> : vector<256x32xf32>
    %23 = tpu.matmul %3, %22, %cst_19 {dimension_numbers = #tpu.dot_dimension_numbers<[1], [0], [0], [1], [0, 0, 1, 1], [], []>} : vector<256x256xf32>, vector<256x32xf32>, vector<256x32xf32> -> vector<256x32xf32>
    %24 = tpu.concatenate %23, %22 in 1 : vector<256x32xf32>, vector<256x32xf32> -> vector<256x64xf32>
    %25 = arith.truncf %24 : vector<256x64xf32> to vector<256x64xbf16>
    %c0_20 = arith.constant 0 : index
    %c0_21 = arith.constant 0 : index
    %26 = vector.load %arg8[%c0_20, %c0_21] : memref<64x32xbf16, #tpu.memory_space<vmem>>, vector<64x32xbf16>
    %cst_22 = arith.constant dense<0.000000e+00> : vector<256x32xf32>
    %27 = tpu.matmul %25, %26, %cst_22 {dimension_numbers = #tpu.dot_dimension_numbers<[1], [0], [0], [1], [0, 0, 1, 1], [], []>} : vector<256x64xbf16>, vector<64x32xbf16>, vector<256x32xf32> -> vector<256x32xf32>
    %c0_23 = arith.constant 0 : index
    %c0_24 = arith.constant 0 : index
    %28 = vector.load %arg9[%c0_23, %c0_24] : memref<1x32xf32, #tpu.memory_space<vmem>>, vector<1x32xf32>
    %29 = vector.broadcast %28 : vector<1x32xf32> to vector<256x32xf32>
    %30 = arith.addf %27, %29 : vector<256x32xf32>
    %cst_25 = arith.constant 0.000000e+00 : f32
    %31 = vector.broadcast %cst_25 : f32 to vector<256x32xf32>
    %32 = arith.maximumf %30, %31 : vector<256x32xf32>
    %cst_26 = arith.constant dense<0.000000e+00> : vector<16x32xf32>
    %33 = tpu.matmul %4, %32, %cst_26 {dimension_numbers = #tpu.dot_dimension_numbers<[1], [0], [0], [1], [0, 0, 1, 1], [], []>} : vector<16x256xf32>, vector<256x32xf32>, vector<16x32xf32> -> vector<16x32xf32>
    %c0_27 = arith.constant 0 : index
    %c0_28 = arith.constant 0 : index
    %34 = vector.load %arg10[%c0_27, %c0_28] : memref<32x128xf32, #tpu.memory_space<vmem>>, vector<32x128xf32>
    %cst_29 = arith.constant dense<0.000000e+00> : vector<16x128xf32>
    %35 = tpu.matmul %33, %34, %cst_29 {dimension_numbers = #tpu.dot_dimension_numbers<[1], [0], [0], [1], [0, 0, 1, 1], [], []>} : vector<16x32xf32>, vector<32x128xf32>, vector<16x128xf32> -> vector<16x128xf32>
    %c0_30 = arith.constant 0 : index
    %c0_31 = arith.constant 0 : index
    %36 = vector.load %arg11[%c0_30, %c0_31] : memref<1x128xf32, #tpu.memory_space<vmem>>, vector<1x128xf32>
    %37 = vector.broadcast %36 : vector<1x128xf32> to vector<16x128xf32>
    %38 = arith.addf %35, %37 : vector<16x128xf32>
    %c0_32 = arith.constant 0 : index
    %c0_33 = arith.constant 0 : index
    %c0_34 = arith.constant 0 : index
    %39 = vector.load %arg12[%c0_32, %c0_33, %c0_34] : memref<1x16x128xf32, #tpu.memory_space<vmem>>, vector<1x16x128xf32>
    %40 = vector.shape_cast %39 : vector<1x16x128xf32> to vector<16x128xf32>
    %41 = vector.shape_cast %38 : vector<16x128xf32> to vector<1x16x128xf32>
    tpu.vector_store %arg12[%c0_32, %c0_33, %c0_34], %41 {strides = array<i32>} : memref<1x16x128xf32, #tpu.memory_space<vmem>>, vector<1x16x128xf32>,
    return
  }
  func.func @transform_0(%arg0: i32) -> (i32, i32, i32) {
    %c0_i32 = arith.constant 0 : i32
    %c0_i32_0 = arith.constant 0 : i32
    %c0_i32_1 = arith.constant 0 : i32
    return %arg0, %c0_i32, %c0_i32_0 : i32, i32, i32
  }
  func.func @transform_1(%arg0: i32) -> (i32, i32, i32) {
    %c0_i32 = arith.constant 0 : i32
    %c0_i32_0 = arith.constant 0 : i32
    %c0_i32_1 = arith.constant 0 : i32
    return %arg0, %c0_i32, %c0_i32_0 : i32, i32, i32
  }
  func.func @transform_2(%arg0: i32) -> (i32, i32) {
    %c0_i32 = arith.constant 0 : i32
    %c0_i32_0 = arith.constant 0 : i32
    %c0_i32_1 = arith.constant 0 : i32
    return %c0_i32, %c0_i32_0 : i32, i32
  }
  func.func @transform_3(%arg0: i32) -> (i32, i32) {
    %c0_i32 = arith.constant 0 : i32
    %c0_i32_0 = arith.constant 0 : i32
    %c0_i32_1 = arith.constant 0 : i32
    return %c0_i32, %c0_i32_0 : i32, i32
  }
  func.func @transform_4(%arg0: i32) -> (i32, i32) {
    %c0_i32 = arith.constant 0 : i32
    %c0_i32_0 = arith.constant 0 : i32
    %c0_i32_1 = arith.constant 0 : i32
    return %c0_i32, %c0_i32_0 : i32, i32
  }
  func.func @transform_5(%arg0: i32) -> (i32, i32) {
    %c0_i32 = arith.constant 0 : i32
    %c0_i32_0 = arith.constant 0 : i32
    %c0_i32_1 = arith.constant 0 : i32
    return %c0_i32, %c0_i32_0 : i32, i32
  }
  func.func @transform_6(%arg0: i32) -> (i32, i32) {
    %c0_i32 = arith.constant 0 : i32
    %c0_i32_0 = arith.constant 0 : i32
    %c0_i32_1 = arith.constant 0 : i32
    return %c0_i32, %c0_i32_0 : i32, i32
  }
  func.func @transform_7(%arg0: i32) -> (i32, i32) {
    %c0_i32 = arith.constant 0 : i32
    %c0_i32_0 = arith.constant 0 : i32
    %c0_i32_1 = arith.constant 0 : i32
    return %c0_i32, %c0_i32_0 : i32, i32
  }
  func.func @transform_8(%arg0: i32) -> (i32, i32) {
    %c0_i32 = arith.constant 0 : i32
    %c0_i32_0 = arith.constant 0 : i32
    %c0_i32_1 = arith.constant 0 : i32
    return %c0_i32, %c0_i32_0 : i32, i32
  }
  func.func @transform_9(%arg0: i32) -> (i32, i32) {
    %c0_i32 = arith.constant 0 : i32
    %c0_i32_0 = arith.constant 0 : i32
    %c0_i32_1 = arith.constant 0 : i32
    return %c0_i32, %c0_i32_0 : i32, i32
  }
  func.func @transform_10(%arg0: i32) -> (i32, i32) {
    %c0_i32 = arith.constant 0 : i32
    %c0_i32_0 = arith.constant 0 : i32
    %c0_i32_1 = arith.constant 0 : i32
    return %c0_i32, %c0_i32_0 : i32, i32
  }
  func.func @transform_11(%arg0: i32) -> (i32, i32, i32) {
    %c0_i32 = arith.constant 0 : i32
    %c0_i32_0 = arith.constant 0 : i32
    %c0_i32_1 = arith.constant 0 : i32
    return %arg0, %c0_i32, %c0_i32_0 : i32, i32, i32
  }
}

</mosaic_0001>

<llo_original>
// kernel: tpu_custom_call.1
$region0: #{tpu_custom_call.1}
  #allocation0 [shape = 'u32[]', space=smem, size = 0x4, offset = 0x4, fixed_abs, tag = 'smem constant byte address 0x4 - core index']
  #allocation1 [shape = 'u32[144,128]{1,0:T(1,128)}', space=vmem, size = 0x12000, scoped, tag = 'internal scratch']
  %s0 = inlined_call_operand.vmem [shape: f32[2,256,8], index: 0, kind: input, shape index: {}]
  %s1 = inlined_call_operand.hbm [shape: f32[2,256,256], index: 1, kind: input, shape index: {}]
  %s2 = inlined_call_operand.vmem [shape: f32[16,256], index: 2, kind: input, shape index: {}]
  %s3 = inlined_call_operand.vmem [shape: bf16[16,32], index: 3, kind: input, shape index: {}]
  %s4 = inlined_call_operand.vmem [shape: f32[1,32], index: 4, kind: input, shape index: {}]
  %s5 = inlined_call_operand.vmem [shape: bf16[32,32], index: 5, kind: input, shape index: {}]
  %s6 = inlined_call_operand.vmem [shape: f32[1,32], index: 6, kind: input, shape index: {}]
  %s7 = inlined_call_operand.vmem [shape: bf16[64,32], index: 7, kind: input, shape index: {}]
  %s8 = inlined_call_operand.vmem [shape: f32[1,32], index: 8, kind: input, shape index: {}]
  %s9 = inlined_call_operand.vmem [shape: f32[32,128], index: 9, kind: input, shape index: {}]
  %s10 = inlined_call_operand.vmem [shape: f32[1,128], index: 10, kind: input, shape index: {}]
  %s11 = inlined_call_operand.hbm [shape: f32[2,16,128], index: 11, kind: output, shape index: {}]
  %s12 = sld [smem:[#allocation0]]
  $region81: #{tpu_custom_call.1} parent=0
    _
  %s14 = ssub.s32 1, %s12
  %s15 = scalar_select 0, %s14, %s12
  $region1: #{tpu_custom_call.1} parent=0
    #allocation2 [shape = 'u8[524288]{0}', space=vmem, size = 0x80000, scoped, tag = 'input window, operand 1']
    #allocation3 [shape = 's32[2]{0}', space=sflag, size = 0x8, scoped, tag = 'scoped memory for tpu_custom_call.1']
    #allocation4 [shape = 's32[2]{0}', space=sflag, size = 0x8, scoped, tag = 'scoped memory for tpu_custom_call.1']
    #allocation5 [shape = 'u8[16384]{0}', space=vmem, size = 0x4000, scoped, tag = 'output window, operand 0']
    %16 = vsyncpa [#allocation3], 0
    %s17 = scalar_lea.sflag [#allocation3], 1
    %18 = vsyncpa %s17, 0
    %19 = vsyncpa [#allocation4], 0
    %s20 = scalar_lea.sflag [#allocation4], 1
    %21 = vsyncpa %s20, 0
    loop: start=0, step=1, limit=4
    $region2: #{tpu_custom_call.1} parent=1 // loop_pre_header
      _
    $region3: #{tpu_custom_call.1} parent=1 // loop_header
      %s23 = sphi 0, %s27
      %p24 = scmp.ge.s32.totalorder %s23, 4
      %s33 = sphi 0, %s35
      %s36 = sphi 0, %s33
      %s37 = sphi 0, %s36
      %s53 = sphi 0, %s37
      %s59 = sphi 0, %s61
      %s62 = sphi 0, %s59
      %s63 = sphi 0, %s62
      %s79 = sphi 0, %s63
      %s83 = sphi 0, %s83
      %s85 = sphi 0, %s83
      %s86 = sphi 0, %s85
      %s100 = sphi 0, %s86
      %s104 = sphi 0, %s104
      %s106 = sphi 0, %s104
      %s107 = sphi 0, %s106
      %s121 = sphi 0, %s107
      %s125 = sphi 0, %s125
      %s127 = sphi 0, %s125
      %s128 = sphi 0, %s127
      %s142 = sphi 0, %s128
      %s146 = sphi 0, %s146
      %s148 = sphi 0, %s146
      %s149 = sphi 0, %s148
      %s163 = sphi 0, %s149
      %s167 = sphi 0, %s167
      %s169 = sphi 0, %s167
      %s170 = sphi 0, %s169
      %s184 = sphi 0, %s170
      %s188 = sphi 0, %s188
      %s190 = sphi 0, %s188
      %s191 = sphi 0, %s190
      %s205 = sphi 0, %s191
      %s209 = sphi 0, %s209
      %s211 = sphi 0, %s209
      %s212 = sphi 0, %s211
      %s226 = sphi 0, %s212
      %s230 = sphi 0, %s230
      %s232 = sphi 0, %s230
      %s233 = sphi 0, %s232
      %s247 = sphi 0, %s233
      %s251 = sphi 0, %s251
      %s253 = sphi 0, %s251
      %s254 = sphi 0, %s253
      %s268 = sphi 0, %s254
      %s274 = sphi 0, %s276
      %s277 = sphi 0, %s274
      %s278 = sphi 0, %s277
      %s294 = sphi 0, %s278
    $region4: #{tpu_custom_call.1} parent=1 // loop_header_branch
      %26 = sbr.rel (%p24) target = $region8
    $region5: #{tpu_custom_call.1} parent=1 // loop_body
      %s28 = ssub.s32 %s23, 1
      %s29 = ssub.s32 %s23, 2
      %s30 = sadd.s32 %s23, 1
      %s31 = ssub.s32 %s23, %s30
      %p32 = scmp.eq.s32.totalorder %s31, 0
      %s34 = sadd.s32 %s33, 1
      %s35 = scalar_select %p32, %s33, %s34
      %p38 = pneg %p32
      %p39 = scmp.eq.s32.totalorder %s23, 1
      %p40 = por %p38, %p39
      %p41 = scmp.ne.s32.totalorder %s33, %s36
      %p42 = scmp.eq.s32.totalorder %s23, 0
      %p43 = por %p41, %p42
      %p44 = scmp.ne.s32.totalorder %s33, %s36
      %p45 = scmp.eq.s32.totalorder %s28, 1
      %p46 = por %p44, %p45
      %p47 = scmp.ne.s32.totalorder %s36, %s37
      %p48 = scmp.eq.s32.totalorder %s28, 0
      %p49 = por %p47, %p48
      %p50 = scmp.ne.s32.totalorder %s36, %s37
      %p51 = scmp.eq.s32.totalorder %s29, 1
      %p52 = por %p50, %p51
      %p54 = scmp.ne.s32.totalorder %s37, %s53
      %p55 = scmp.eq.s32.totalorder %s29, 0
      %p56 = por %p54, %p55
      %s57 = ssub.s32 %s23, %s30
      %p58 = scmp.eq.s32.totalorder %s57, 0
      %s60 = sadd.s32 %s59, 1
      %s61 = scalar_select %p58, %s59, %s60
      %p64 = pneg %p58
      %p65 = scmp.eq.s32.totalorder %s23, 1
      %p66 = por %p64, %p65
      %p67 = scmp.ne.s32.totalorder %s59, %s62
      %p68 = scmp.eq.s32.totalorder %s23, 0
      %p69 = por %p67, %p68
      %p70 = scmp.ne.s32.totalorder %s59, %s62
      %p71 = scmp.eq.s32.totalorder %s28, 1
      %p72 = por %p70, %p71
      %p73 = scmp.ne.s32.totalorder %s62, %s63
      %p74 = scmp.eq.s32.totalorder %s28, 0
      %p75 = por %p73, %p74
      %p76 = scmp.ne.s32.totalorder %s62, %s63
      %p77 = scmp.eq.s32.totalorder %s29, 1
      %p78 = por %p76, %p77
      %p80 = scmp.ne.s32.totalorder %s63, %s79
      %p81 = scmp.eq.s32.totalorder %s29, 0
      %p82 = por %p80, %p81
      %s84 = sadd.s32 %s83, 1
      %p87 = scmp.eq.s32.totalorder %s23, 1
      %p88 = scmp.ne.s32.totalorder %s83, %s85
      %p89 = scmp.eq.s32.totalorder %s23, 0
      %p90 = por %p88, %p89
      %p91 = scmp.ne.s32.totalorder %s83, %s85
      %p92 = scmp.eq.s32.totalorder %s28, 1
      %p93 = por %p91, %p92
      %p94 = scmp.ne.s32.totalorder %s85, %s86
      %p95 = scmp.eq.s32.totalorder %s28, 0
      %p96 = por %p94, %p95
      %p97 = scmp.ne.s32.totalorder %s85, %s86
      %p98 = scmp.eq.s32.totalorder %s29, 1
      %p99 = por %p97, %p98
      %p101 = scmp.ne.s32.totalorder %s86, %s100
      %p102 = scmp.eq.s32.totalorder %s29, 0
      %p103 = por %p101, %p102
      %s105 = sadd.s32 %s104, 1
      %p108 = scmp.eq.s32.totalorder %s23, 1
      %p109 = scmp.ne.s32.totalorder %s104, %s106
      %p110 = scmp.eq.s32.totalorder %s23, 0
      %p111 = por %p109, %p110
      %p112 = scmp.ne.s32.totalorder %s104, %s106
      %p113 = scmp.eq.s32.totalorder %s28, 1
      %p114 = por %p112, %p113
      %p115 = scmp.ne.s32.totalorder %s106, %s107
      %p116 = scmp.eq.s32.totalorder %s28, 0
      %p117 = por %p115, %p116
      %p118 = scmp.ne.s32.totalorder %s106, %s107
      %p119 = scmp.eq.s32.totalorder %s29, 1
      %p120 = por %p118, %p119
      %p122 = scmp.ne.s32.totalorder %s107, %s121
      %p123 = scmp.eq.s32.totalorder %s29, 0
      %p124 = por %p122, %p123
      %s126 = sadd.s32 %s125, 1
      %p129 = scmp.eq.s32.totalorder %s23, 1
      %p130 = scmp.ne.s32.totalorder %s125, %s127
      %p131 = scmp.eq.s32.totalorder %s23, 0
      %p132 = por %p130, %p131
      %p133 = scmp.ne.s32.totalorder %s125, %s127
      %p134 = scmp.eq.s32.totalorder %s28, 1
      %p135 = por %p133, %p134
      %p136 = scmp.ne.s32.totalorder %s127, %s128
      %p137 = scmp.eq.s32.totalorder %s28, 0
      %p138 = por %p136, %p137
      %p139 = scmp.ne.s32.totalorder %s127, %s128
      %p140 = scmp.eq.s32.totalorder %s29, 1
      %p141 = por %p139, %p140
      %p143 = scmp.ne.s32.totalorder %s128, %s142
      %p144 = scmp.eq.s32.totalorder %s29, 0
      %p145 = por %p143, %p144
      %s147 = sadd.s32 %s146, 1
      %p150 = scmp.eq.s32.totalorder %s23, 1
      %p151 = scmp.ne.s32.totalorder %s146, %s148
      %p152 = scmp.eq.s32.totalorder %s23, 0
      %p153 = por %p151, %p152
      %p154 = scmp.ne.s32.totalorder %s146, %s148
      %p155 = scmp.eq.s32.totalorder %s28, 1
      %p156 = por %p154, %p155
      %p157 = scmp.ne.s32.totalorder %s148, %s149
      %p158 = scmp.eq.s32.totalorder %s28, 0
      %p159 = por %p157, %p158
      %p160 = scmp.ne.s32.totalorder %s148, %s149
      %p161 = scmp.eq.s32.totalorder %s29, 1
      %p162 = por %p160, %p161
      %p164 = scmp.ne.s32.totalorder %s149, %s163
      %p165 = scmp.eq.s32.totalorder %s29, 0
      %p166 = por %p164, %p165
      %s168 = sadd.s32 %s167, 1
      %p171 = scmp.eq.s32.totalorder %s23, 1
      %p172 = scmp.ne.s32.totalorder %s167, %s169
      %p173 = scmp.eq.s32.totalorder %s23, 0
      %p174 = por %p172, %p173
      %p175 = scmp.ne.s32.totalorder %s167, %s169
      %p176 = scmp.eq.s32.totalorder %s28, 1
      %p177 = por %p175, %p176
      %p178 = scmp.ne.s32.totalorder %s169, %s170
      %p179 = scmp.eq.s32.totalorder %s28, 0
      %p180 = por %p178, %p179
      %p181 = scmp.ne.s32.totalorder %s169, %s170
      %p182 = scmp.eq.s32.totalorder %s29, 1
      %p183 = por %p181, %p182
      %p185 = scmp.ne.s32.totalorder %s170, %s184
      %p186 = scmp.eq.s32.totalorder %s29, 0
      %p187 = por %p185, %p186
      %s189 = sadd.s32 %s188, 1
      %p192 = scmp.eq.s32.totalorder %s23, 1
      %p193 = scmp.ne.s32.totalorder %s188, %s190
      %p194 = scmp.eq.s32.totalorder %s23, 0
      %p195 = por %p193, %p194
      %p196 = scmp.ne.s32.totalorder %s188, %s190
      %p197 = scmp.eq.s32.totalorder %s28, 1
      %p198 = por %p196, %p197
      %p199 = scmp.ne.s32.totalorder %s190, %s191
      %p200 = scmp.eq.s32.totalorder %s28, 0
      %p201 = por %p199, %p200
      %p202 = scmp.ne.s32.totalorder %s190, %s191
      %p203 = scmp.eq.s32.totalorder %s29, 1
      %p204 = por %p202, %p203
      %p206 = scmp.ne.s32.totalorder %s191, %s205
      %p207 = scmp.eq.s32.totalorder %s29, 0
      %p208 = por %p206, %p207
      %s210 = sadd.s32 %s209, 1
      %p213 = scmp.eq.s32.totalorder %s23, 1
      %p214 = scmp.ne.s32.totalorder %s209, %s211
      %p215 = scmp.eq.s32.totalorder %s23, 0
      %p216 = por %p214, %p215
      %p217 = scmp.ne.s32.totalorder %s209, %s211
      %p218 = scmp.eq.s32.totalorder %s28, 1
      %p219 = por %p217, %p218
      %p220 = scmp.ne.s32.totalorder %s211, %s212
      %p221 = scmp.eq.s32.totalorder %s28, 0
      %p222 = por %p220, %p221
      %p223 = scmp.ne.s32.totalorder %s211, %s212
      %p224 = scmp.eq.s32.totalorder %s29, 1
      %p225 = por %p223, %p224
      %p227 = scmp.ne.s32.totalorder %s212, %s226
      %p228 = scmp.eq.s32.totalorder %s29, 0
      %p229 = por %p227, %p228
      %s231 = sadd.s32 %s230, 1
      %p234 = scmp.eq.s32.totalorder %s23, 1
      %p235 = scmp.ne.s32.totalorder %s230, %s232
      %p236 = scmp.eq.s32.totalorder %s23, 0
      %p237 = por %p235, %p236
      %p238 = scmp.ne.s32.totalorder %s230, %s232
      %p239 = scmp.eq.s32.totalorder %s28, 1
      %p240 = por %p238, %p239
      %p241 = scmp.ne.s32.totalorder %s232, %s233
      %p242 = scmp.eq.s32.totalorder %s28, 0
      %p243 = por %p241, %p242
      %p244 = scmp.ne.s32.totalorder %s232, %s233
      %p245 = scmp.eq.s32.totalorder %s29, 1
      %p246 = por %p244, %p245
      %p248 = scmp.ne.s32.totalorder %s233, %s247
      %p249 = scmp.eq.s32.totalorder %s29, 0
      %p250 = por %p248, %p249
      %s252 = sadd.s32 %s251, 1
      %p255 = scmp.eq.s32.totalorder %s23, 1
      %p256 = scmp.ne.s32.totalorder %s251, %s253
      %p257 = scmp.eq.s32.totalorder %s23, 0
      %p258 = por %p256, %p257
      %p259 = scmp.ne.s32.totalorder %s251, %s253
      %p260 = scmp.eq.s32.totalorder %s28, 1
      %p261 = por %p259, %p260
      %p262 = scmp.ne.s32.totalorder %s253, %s254
      %p263 = scmp.eq.s32.totalorder %s28, 0
      %p264 = por %p262, %p263
      %p265 = scmp.ne.s32.totalorder %s253, %s254
      %p266 = scmp.eq.s32.totalorder %s29, 1
      %p267 = por %p265, %p266
      %p269 = scmp.ne.s32.totalorder %s254, %s268
      %p270 = scmp.eq.s32.totalorder %s29, 0
      %p271 = por %p269, %p270
      %s272 = ssub.s32 %s23, %s30
      %p273 = scmp.eq.s32.totalorder %s272, 0
      %s275 = sadd.s32 %s274, 1
      %s276 = scalar_select %p273, %s274, %s275
      %p279 = pneg %p273
      %p280 = scmp.eq.s32.totalorder %s23, 1
      %p281 = por %p279, %p280
      %p282 = scmp.ne.s32.totalorder %s274, %s277
      %p283 = scmp.eq.s32.totalorder %s23, 0
      %p284 = por %p282, %p283
      %p285 = scmp.ne.s32.totalorder %s274, %s277
      %p286 = scmp.eq.s32.totalorder %s28, 1
      %p287 = por %p285, %p286
      %p288 = scmp.ne.s32.totalorder %s277, %s278
      %p289 = scmp.eq.s32.totalorder %s28, 0
      %p290 = por %p288, %p289
      %p291 = scmp.ne.s32.totalorder %s277, %s278
      %p292 = scmp.eq.s32.totalorder %s29, 1
      %p293 = por %p291, %p292
      %p295 = scmp.ne.s32.totalorder %s278, %s294
      %p296 = scmp.eq.s32.totalorder %s29, 0
      %p297 = por %p295, %p296
      %p298 = scmp.le.s32.totalorder 1, %s23
      %p299 = scmp.lt.s32.totalorder %s23, 3
      %p300 = pnand %p298, %p299
      %p301 = pneg %p300
      // Predicated region
      $region9: #{tpu_custom_call.1} parent=5 // pred_check
        _
      $region10: #{tpu_custom_call.1} parent=5 // pred_check_branch
        %303 = sbr.rel (%p300) target = $region12
      $region11: #{tpu_custom_call.1} parent=5 // pred_region
        %s304 = ssub.s32 %s23, 1
        // Predicated region
        $region13: #{tpu_custom_call.1} parent=11 // pred_check
          %p305 = pneg %p96
        $region14: #{tpu_custom_call.1} parent=11 // pred_check_branch
          %307 = sbr.rel (%p305) target = $region16
        $region15: #{tpu_custom_call.1} parent=11 // pred_region
          _
        $region16: #{tpu_custom_call.1} parent=11 // pred_fallthru
          _
        // Predicated region
        $region17: #{tpu_custom_call.1} parent=11 // pred_check
          %p308 = pneg %p117
        $region18: #{tpu_custom_call.1} parent=11 // pred_check_branch
          %310 = sbr.rel (%p308) target = $region20
        $region19: #{tpu_custom_call.1} parent=11 // pred_region
          _
        $region20: #{tpu_custom_call.1} parent=11 // pred_fallthru
          _
        // Predicated region
        $region21: #{tpu_custom_call.1} parent=11 // pred_check
          %p311 = pneg %p138
        $region22: #{tpu_custom_call.1} parent=11 // pred_check_branch
          %313 = sbr.rel (%p311) target = $region24
        $region23: #{tpu_custom_call.1} parent=11 // pred_region
          _
        $region24: #{tpu_custom_call.1} parent=11 // pred_fallthru
          _
        // Predicated region
        $region25: #{tpu_custom_call.1} parent=11 // pred_check
          %p314 = pneg %p159
        $region26: #{tpu_custom_call.1} parent=11 // pred_check_branch
          %316 = sbr.rel (%p314) target = $region28
        $region27: #{tpu_custom_call.1} parent=11 // pred_region
          _
        $region28: #{tpu_custom_call.1} parent=11 // pred_fallthru
          _
        // Predicated region
        $region29: #{tpu_custom_call.1} parent=11 // pred_check
          %p317 = pneg %p180
        $region30: #{tpu_custom_call.1} parent=11 // pred_check_branch
          %319 = sbr.rel (%p317) target = $region32
        $region31: #{tpu_custom_call.1} parent=11 // pred_region
          _
        $region32: #{tpu_custom_call.1} parent=11 // pred_fallthru
          _
        // Predicated region
        $region33: #{tpu_custom_call.1} parent=11 // pred_check
          %p320 = pneg %p201
        $region34: #{tpu_custom_call.1} parent=11 // pred_check_branch
          %322 = sbr.rel (%p320) target = $region36
        $region35: #{tpu_custom_call.1} parent=11 // pred_region
          _
        $region36: #{tpu_custom_call.1} parent=11 // pred_fallthru
          _
        // Predicated region
        $region37: #{tpu_custom_call.1} parent=11 // pred_check
          %p323 = pneg %p222
        $region38: #{tpu_custom_call.1} parent=11 // pred_check_branch
          %325 = sbr.rel (%p323) target = $region40
        $region39: #{tpu_custom_call.1} parent=11 // pred_region
          _
        $region40: #{tpu_custom_call.1} parent=11 // pred_fallthru
          _
        // Predicated region
        $region41: #{tpu_custom_call.1} parent=11 // pred_check
          %p326 = pneg %p243
        $region42: #{tpu_custom_call.1} parent=11 // pred_check_branch
          %328 = sbr.rel (%p326) target = $region44
        $region43: #{tpu_custom_call.1} parent=11 // pred_region
          _
        $region44: #{tpu_custom_call.1} parent=11 // pred_fallthru
          _
        // Predicated region
        $region45: #{tpu_custom_call.1} parent=11 // pred_check
          %p329 = pneg %p264
        $region46: #{tpu_custom_call.1} parent=11 // pred_check_branch
          %331 = sbr.rel (%p329) target = $region48
        $region47: #{tpu_custom_call.1} parent=11 // pred_region
          _
        $region48: #{tpu_custom_call.1} parent=11 // pred_fallthru
          _
      $region12: #{tpu_custom_call.1} parent=5 // pred_fallthru
        _
      %p332 = scmp.lt.s32.totalorder %s23, 2
      // Predicated region
      $region49: #{tpu_custom_call.1} parent=5 // pred_check
        %p333 = pneg %p332
      $region50: #{tpu_custom_call.1} parent=5 // pred_check_branch
        %335 = sbr.rel (%p333) target = $region52
      $region51: #{tpu_custom_call.1} parent=5 // pred_region
        // Predicated region
        $region53: #{tpu_custom_call.1} parent=51 // pred_check
          %p336 = pneg %p43
        $region54: #{tpu_custom_call.1} parent=51 // pred_check_branch
          %338 = sbr.rel (%p336) target = $region56
        $region55: #{tpu_custom_call.1} parent=51 // pred_region
          %p339 = scmp.lt.s32.totalorder %s23, 1
          %s340 = scalar_select %p339, %s23, 1
          %s341 = smul.addr %s340, 32
          %s342 = smul.addr %s341, 8
          %s343 = scalar_lea.vmem %s0, %s342
        $region56: #{tpu_custom_call.1} parent=51 // pred_fallthru
          _
        // Predicated region
        $region57: #{tpu_custom_call.1} parent=51 // pred_check
          %p344 = pneg %p69
        $region58: #{tpu_custom_call.1} parent=51 // pred_check_branch
          %346 = sbr.rel (%p344) target = $region60
        $region59: #{tpu_custom_call.1} parent=51 // pred_region
          %s347 = sand.u32 %s59, 1
          %s348 = scalar_lea.sflag [#allocation3], %s347
          %s349 = sand.u32 %s59, 1
          %s350 = smul.addr %s349, 512
          %s351 = scalar_lea.vmem [#allocation2], %s350
          %s353 = ssub.s32 8192, 8192
          %354 = vsyncadd %s348, %s353
          %s355 = smul.addr %s23, 64
          %s356 = smul.addr %s355, 128
          %s357 = scalar_lea.hbm %s1, %s356
          %s358 = sshll.u32 %s351, 4
          %s359 = int_to_ptr.vmem [resolvable:$true] %s358
          %364 = dma.hbm_to_vmem [thread:$0]  %s357, 8192, %s359, %s348, 256, 256, 16
        $region60: #{tpu_custom_call.1} parent=51 // pred_fallthru
          _
      $region52: #{tpu_custom_call.1} parent=5 // pred_fallthru
        _
      %p365 = scmp.le.s32.totalorder 1, %s23
      %p366 = scmp.lt.s32.totalorder %s23, 3
      %p367 = pnand %p365, %p366
      %p368 = pneg %p367
      // Predicated region
      $region61: #{tpu_custom_call.1} parent=5 // pred_check
        _
      $region62: #{tpu_custom_call.1} parent=5 // pred_check_branch
        %370 = sbr.rel (%p367) target = $region64
      $region63: #{tpu_custom_call.1} parent=5 // pred_region
        %s371 = ssub.s32 %s23, 1
        %s372 = sand.u32 %s62, 1
        %s373 = scalar_lea.sflag [#allocation3], %s372
        %s374 = sand.u32 %s62, 1
        %s375 = smul.addr %s374, 512
        %s376 = scalar_lea.vmem [#allocation2], %s375
        // Predicated region
        $region65: #{tpu_custom_call.1} parent=63 // pred_check
          %p377 = pneg %p75
        $region66: #{tpu_custom_call.1} parent=63 // pred_check_branch
          %379 = sbr.rel (%p377) target = $region68
        $region67: #{tpu_custom_call.1} parent=63 // pred_region
          %380 = dma.done %s373, 8192
        $region68: #{tpu_custom_call.1} parent=63 // pred_fallthru
          _
        %p381 = scmp.lt.s32.totalorder %s28, 1
        %s382 = scalar_select %p381, %s28, 1
        %s383 = smul.addr %s382, 32
        %s384 = smul.addr %s383, 8
        %s385 = scalar_lea.vmem %s0, %s384
        %p386 = pneg %p49
        %p387 = pneg %p46
        %s388 = sand.u32 %s62, 1
        %s389 = scalar_lea.sflag [#allocation3], %s388
        %s390 = sand.u32 %s62, 1
        %s391 = smul.addr %s390, 512
        %s392 = scalar_lea.vmem [#allocation2], %s391
        %p393 = pneg %p75
        %p394 = pneg %p72
        %p395 = pneg %p96
        %p396 = pneg %p93
        %p397 = pneg %p117
        %p398 = pneg %p114
        %p399 = pneg %p138
        %p400 = pneg %p135
        %p401 = pneg %p159
        %p402 = pneg %p156
        %p403 = pneg %p180
        %p404 = pneg %p177
        %p405 = pneg %p201
        %p406 = pneg %p198
        %p407 = pneg %p222
        %p408 = pneg %p219
        %p409 = pneg %p243
        %p410 = pneg %p240
        %p411 = pneg %p264
        %p412 = pneg %p261
        %p413 = pneg %p290
        %p414 = pneg %p287
        %s415 = sand.u32 %s277, 1
        %s416 = scalar_lea.sflag [#allocation4], %s415
        %s417 = sand.u32 %s277, 1
        %s418 = smul.addr %s417, 16
        %s419 = scalar_lea.vmem [#allocation5], %s418
        %p420 = scmp.lt.s32.totalorder %s28, 1
        %s421 = scalar_select %p420, %s28, 1
        %s422 = smul.addr %s421, 32
        %s423 = smul.addr %s422, 8
        %s424 = scalar_lea.vmem %s0, %s423
        %v426 = vld [vmem:[%s424] sm:$0xff]
        %v427 = vld [vmem:[%s424 + $0x8] sm:$0xff]
        %v428 = vld [vmem:[%s424 + $0x10] sm:$0xff]
        %v429 = vld [vmem:[%s424 + $0x18] sm:$0xff]
        %v430 = vld [vmem:[%s424 + $0x20] sm:$0xff]
        %v431 = vld [vmem:[%s424 + $0x28] sm:$0xff]
        %v432 = vld [vmem:[%s424 + $0x30] sm:$0xff]
        %v433 = vld [vmem:[%s424 + $0x38] sm:$0xff]
        %v434 = vld [vmem:[%s424 + $0x40] sm:$0xff]
        %v435 = vld [vmem:[%s424 + $0x48] sm:$0xff]
        %v436 = vld [vmem:[%s424 + $0x50] sm:$0xff]
        %v437 = vld [vmem:[%s424 + $0x58] sm:$0xff]
        %v438 = vld [vmem:[%s424 + $0x60] sm:$0xff]
        %v439 = vld [vmem:[%s424 + $0x68] sm:$0xff]
        %v440 = vld [vmem:[%s424 + $0x70] sm:$0xff]
        %v441 = vld [vmem:[%s424 + $0x78] sm:$0xff]
        %v442 = vld [vmem:[%s424 + $0x80] sm:$0xff]
        %v443 = vld [vmem:[%s424 + $0x88] sm:$0xff]
        %v444 = vld [vmem:[%s424 + $0x90] sm:$0xff]
        %v445 = vld [vmem:[%s424 + $0x98] sm:$0xff]
        %v446 = vld [vmem:[%s424 + $0xa0] sm:$0xff]
        %v447 = vld [vmem:[%s424 + $0xa8] sm:$0xff]
        %v448 = vld [vmem:[%s424 + $0xb0] sm:$0xff]
        %v449 = vld [vmem:[%s424 + $0xb8] sm:$0xff]
        %v450 = vld [vmem:[%s424 + $0xc0] sm:$0xff]
        %v451 = vld [vmem:[%s424 + $0xc8] sm:$0xff]
        %v452 = vld [vmem:[%s424 + $0xd0] sm:$0xff]
        %v453 = vld [vmem:[%s424 + $0xd8] sm:$0xff]
        %v454 = vld [vmem:[%s424 + $0xe0] sm:$0xff]
        %v455 = vld [vmem:[%s424 + $0xe8] sm:$0xff]
        %v456 = vld [vmem:[%s424 + $0xf0] sm:$0xff]
        %v457 = vld [vmem:[%s424 + $0xf8] sm:$0xff]
        %v458 = vld [vmem:[%s376] sm:$0xff]
        %v459 = vld [vmem:[%s376 + $0x8] sm:$0xff]
        %v460 = vld [vmem:[%s376 + $0x10] sm:$0xff]
        %v461 = vld [vmem:[%s376 + $0x18] sm:$0xff]
        %v462 = vld [vmem:[%s376 + $0x20] sm:$0xff]
        %v463 = vld [vmem:[%s376 + $0x28] sm:$0xff]
        %v464 = vld [vmem:[%s376 + $0x30] sm:$0xff]
        %v465 = vld [vmem:[%s376 + $0x38] sm:$0xff]
        %v466 = vld [vmem:[%s376 + $0x40] sm:$0xff]
        %v467 = vld [vmem:[%s376 + $0x48] sm:$0xff]
        %v468 = vld [vmem:[%s376 + $0x50] sm:$0xff]
        %v469 = vld [vmem:[%s376 + $0x58] sm:$0xff]
        %v470 = vld [vmem:[%s376 + $0x60] sm:$0xff]
        %v471 = vld [vmem:[%s376 + $0x68] sm:$0xff]
        %v472 = vld [vmem:[%s376 + $0x70] sm:$0xff]
        %v473 = vld [vmem:[%s376 + $0x78] sm:$0xff]
        %v474 = vld [vmem:[%s376 + $0x80] sm:$0xff]
        %v475 = vld [vmem:[%s376 + $0x88] sm:$0xff]
        %v476 = vld [vmem:[%s376 + $0x90] sm:$0xff]
        %v477 = vld [vmem:[%s376 + $0x98] sm:$0xff]
        %v478 = vld [vmem:[%s376 + $0xa0] sm:$0xff]
        %v479 = vld [vmem:[%s376 + $0xa8] sm:$0xff]
        %v480 = vld [vmem:[%s376 + $0xb0] sm:$0xff]
        %v481 = vld [vmem:[%s376 + $0xb8] sm:$0xff]
        %v482 = vld [vmem:[%s376 + $0xc0] sm:$0xff]
        %v483 = vld [vmem:[%s376 + $0xc8] sm:$0xff]
        %v484 = vld [vmem:[%s376 + $0xd0] sm:$0xff]
        %v485 = vld [vmem:[%s376 + $0xd8] sm:$0xff]
        %v486 = vld [vmem:[%s376 + $0xe0] sm:$0xff]
        %v487 = vld [vmem:[%s376 + $0xe8] sm:$0xff]
        %v488 = vld [vmem:[%s376 + $0xf0] sm:$0xff]
        %v489 = vld [vmem:[%s376 + $0xf8] sm:$0xff]
        %v490 = vld [vmem:[%s376 + $0x100] sm:$0xff]
        %v491 = vld [vmem:[%s376 + $0x108] sm:$0xff]
        %v492 = vld [vmem:[%s376 + $0x110] sm:$0xff]
        %v493 = vld [vmem:[%s376 + $0x118] sm:$0xff]
        %v494 = vld [vmem:[%s376 + $0x120] sm:$0xff]
        %v495 = vld [vmem:[%s376 + $0x128] sm:$0xff]
        %v496 = vld [vmem:[%s376 + $0x130] sm:$0xff]
        %v497 = vld [vmem:[%s376 + $0x138] sm:$0xff]
        %v498 = vld [vmem:[%s376 + $0x140] sm:$0xff]
        %v499 = vld [vmem:[%s376 + $0x148] sm:$0xff]
        %v500 = vld [vmem:[%s376 + $0x150] sm:$0xff]
        %v501 = vld [vmem:[%s376 + $0x158] sm:$0xff]
        %v502 = vld [vmem:[%s376 + $0x160] sm:$0xff]
        %v503 = vld [vmem:[%s376 + $0x168] sm:$0xff]
        %v504 = vld [vmem:[%s376 + $0x170] sm:$0xff]
        %v505 = vld [vmem:[%s376 + $0x178] sm:$0xff]
        %v506 = vld [vmem:[%s376 + $0x180] sm:$0xff]
        %v507 = vld [vmem:[%s376 + $0x188] sm:$0xff]
        %v508 = vld [vmem:[%s376 + $0x190] sm:$0xff]
        %v509 = vld [vmem:[%s376 + $0x198] sm:$0xff]
        %v510 = vld [vmem:[%s376 + $0x1a0] sm:$0xff]
        %v511 = vld [vmem:[%s376 + $0x1a8] sm:$0xff]
        %v512 = vld [vmem:[%s376 + $0x1b0] sm:$0xff]
        %v513 = vld [vmem:[%s376 + $0x1b8] sm:$0xff]
        %v514 = vld [vmem:[%s376 + $0x1c0] sm:$0xff]
        %v515 = vld [vmem:[%s376 + $0x1c8] sm:$0xff]
        %v516 = vld [vmem:[%s376 + $0x1d0] sm:$0xff]
        %v517 = vld [vmem:[%s376 + $0x1d8] sm:$0xff]
        %v518 = vld [vmem:[%s376 + $0x1e0] sm:$0xff]
        %v519 = vld [vmem:[%s376 + $0x1e8] sm:$0xff]
        %v520 = vld [vmem:[%s376 + $0x1f0] sm:$0xff]
        %v521 = vld [vmem:[%s376 + $0x1f8] sm:$0xff]
        %v522 = vld [vmem:[%s2] sm:$0xff]
        %v523 = vld [vmem:[%s2 + $0x8] sm:$0xff]
        %v524 = vld [vmem:[%s2 + $0x10] sm:$0xff]
        %v525 = vld [vmem:[%s2 + $0x18] sm:$0xff]
        %526 = vmatprep.subr.mxu0 0.0
        %527 = vmatpush1.msra.mxu0 %v441
        %528 = vmatprep.subr.mxu0 0.0
        %529 = vmatpush1.msra.mxu0 %v440
        %530 = vmatprep.subr.mxu0 0.0
        %531 = vmatpush1.msra.mxu0 %v439
        %532 = vmatprep.subr.mxu0 0.0
        %533 = vmatpush1.msra.mxu0 %v438
        %534 = vmatprep.subr.mxu0 0.0
        %535 = vmatpush1.msra.mxu0 %v437
        %536 = vmatprep.subr.mxu0 0.0
        %537 = vmatpush1.msra.mxu0 %v436
        %538 = vmatprep.subr.mxu0 0.0
        %539 = vmatpush1.msra.mxu0 %v435
        %540 = vmatprep.subr.mxu0 0.0
        %541 = vmatpush1.msra.mxu0 %v434
        %542 = vmatprep.subr.mxu0 0.0
        %543 = vmatpush1.msra.mxu0 %v433
        %544 = vmatprep.subr.mxu0 0.0
        %545 = vmatpush1.msra.mxu0 %v432
        %546 = vmatprep.subr.mxu0 0.0
        %547 = vmatpush1.msra.mxu0 %v431
        %548 = vmatprep.subr.mxu0 0.0
        %549 = vmatpush1.msra.mxu0 %v430
        %550 = vmatprep.subr.mxu0 0.0
        %551 = vmatpush1.msra.mxu0 %v429
        %552 = vmatprep.subr.mxu0 0.0
        %553 = vmatpush1.msra.mxu0 %v428
        %554 = vmatprep.subr.mxu0 0.0
        %555 = vmatpush1.msra.mxu0 %v427
        %556 = vmatprep.subr.mxu0 0.0
        %557 = vmatpush1.msra.mxu0 %v426
        %558 = vmatprep.subr.mxu0 0.0
        %559 = vmatpush2.msra.mxu0 %v457
        %560 = vmatprep.subr.mxu0 0.0
        %561 = vmatpush2.msra.mxu0 %v456
        %562 = vmatprep.subr.mxu0 0.0
        %563 = vmatpush2.msra.mxu0 %v455
        %564 = vmatprep.subr.mxu0 0.0
        %565 = vmatpush2.msra.mxu0 %v454
        %566 = vmatprep.subr.mxu0 0.0
        %567 = vmatpush2.msra.mxu0 %v453
        %568 = vmatprep.subr.mxu0 0.0
        %569 = vmatpush2.msra.mxu0 %v452
        %570 = vmatprep.subr.mxu0 0.0
        %571 = vmatpush2.msra.mxu0 %v451
        %572 = vmatprep.subr.mxu0 0.0
        %573 = vmatpush2.msra.mxu0 %v450
        %574 = vmatprep.subr.mxu0 0.0
        %575 = vmatpush2.msra.mxu0 %v449
        %576 = vmatprep.subr.mxu0 0.0
        %577 = vmatpush2.msra.mxu0 %v448
        %578 = vmatprep.subr.mxu0 0.0
        %579 = vmatpush2.msra.mxu0 %v447
        %580 = vmatprep.subr.mxu0 0.0
        %581 = vmatpush2.msra.mxu0 %v446
        %582 = vmatprep.subr.mxu0 0.0
        %583 = vmatpush2.msra.mxu0 %v445
        %584 = vmatprep.subr.mxu0 0.0
        %585 = vmatpush2.msra.mxu0 %v444
        %586 = vmatprep.subr.mxu0 0.0
        %587 = vmatpush2.msra.mxu0 %v443
        %588 = vmatprep.subr.mxu0 0.0
        %589 = vmatpush2.msra.mxu0 %v442
        %590 = vmatprep.mubr.f32.mxu0 %v459
        %591 = vmatmul.mubr.f32.gmra.mxu0 %v458
        %v592 = vpop.f32.mrf.mxu0
        %v593 = vadd.f32 0.0, %v592
        %v594 = vpop.f32.mrf.mxu0
        %595 = vmatprep.mubr.f32.mxu0 %v461
        %596 = vmatmul.mubr.f32.gmra.mxu0 %v460
        %v597 = vpop.f32.mrf.mxu0
        %v598 = vadd.f32 0.0, %v597
        %v599 = vpop.f32.mrf.mxu0
        %600 = vmatprep.mubr.f32.mxu0 %v463
        %601 = vmatmul.mubr.f32.gmra.mxu0 %v462
        %v602 = vpop.f32.mrf.mxu0
        %v603 = vadd.f32 0.0, %v602
        %v604 = vpop.f32.mrf.mxu0
        %605 = vmatprep.mubr.f32.mxu0 %v465
        %606 = vmatmul.mubr.f32.gmra.mxu0 %v464
        %v607 = vpop.f32.mrf.mxu0
        %v608 = vadd.f32 0.0, %v607
        %v609 = vpop.f32.mrf.mxu0
        %610 = vmatprep.mubr.f32.mxu0 %v467
        %611 = vmatmul.mubr.f32.gmra.mxu0 %v466
        %v612 = vpop.f32.mrf.mxu0
        %v613 = vadd.f32 0.0, %v612
        %v614 = vpop.f32.mrf.mxu0
        %615 = vmatprep.mubr.f32.mxu0 %v469
        %616 = vmatmul.mubr.f32.gmra.mxu0 %v468
        %v617 = vpop.f32.mrf.mxu0
        %v618 = vadd.f32 0.0, %v617
        %v619 = vpop.f32.mrf.mxu0
        %620 = vmatprep.mubr.f32.mxu0 %v471
        %621 = vmatmul.mubr.f32.gmra.mxu0 %v470
        %v622 = vpop.f32.mrf.mxu0
        %v623 = vadd.f32 0.0, %v622
        %v624 = vpop.f32.mrf.mxu0
        %625 = vmatprep.mubr.f32.mxu0 %v473
        %626 = vmatmul.mubr.f32.gmra.mxu0 %v472
        %v627 = vpop.f32.mrf.mxu0
        %v628 = vadd.f32 0.0, %v627
        %v629 = vpop.f32.mrf.mxu0
        %630 = vmatprep.mubr.f32.mxu0 %v475
        %631 = vmatmul.mubr.f32.gmra.mxu0 %v474
        %v632 = vpop.f32.mrf.mxu0
        %v633 = vadd.f32 0.0, %v632
        %v634 = vpop.f32.mrf.mxu0
        %635 = vmatprep.mubr.f32.mxu0 %v477
        %636 = vmatmul.mubr.f32.gmra.mxu0 %v476
        %v637 = vpop.f32.mrf.mxu0
        %v638 = vadd.f32 0.0, %v637
        %v639 = vpop.f32.mrf.mxu0
        %640 = vmatprep.mubr.f32.mxu0 %v479
        %641 = vmatmul.mubr.f32.gmra.mxu0 %v478
        %v642 = vpop.f32.mrf.mxu0
        %v643 = vadd.f32 0.0, %v642
        %v644 = vpop.f32.mrf.mxu0
        %645 = vmatprep.mubr.f32.mxu0 %v481
        %646 = vmatmul.mubr.f32.gmra.mxu0 %v480
        %v647 = vpop.f32.mrf.mxu0
        %v648 = vadd.f32 0.0, %v647
        %v649 = vpop.f32.mrf.mxu0
        %650 = vmatprep.mubr.f32.mxu0 %v483
        %651 = vmatmul.mubr.f32.gmra.mxu0 %v482
        %v652 = vpop.f32.mrf.mxu0
        %v653 = vadd.f32 0.0, %v652
        %v654 = vpop.f32.mrf.mxu0
        %655 = vmatprep.mubr.f32.mxu0 %v485
        %656 = vmatmul.mubr.f32.gmra.mxu0 %v484
        %v657 = vpop.f32.mrf.mxu0
        %v658 = vadd.f32 0.0, %v657
        %v659 = vpop.f32.mrf.mxu0
        %660 = vmatprep.mubr.f32.mxu0 %v487
        %661 = vmatmul.mubr.f32.gmra.mxu0 %v486
        %v662 = vpop.f32.mrf.mxu0
        %v663 = vadd.f32 0.0, %v662
        %v664 = vpop.f32.mrf.mxu0
        %665 = vmatprep.mubr.f32.mxu0 %v489
        %666 = vmatmul.mubr.f32.gmra.mxu0 %v488
        %v667 = vpop.f32.mrf.mxu0
        %v668 = vadd.f32 0.0, %v667
        %v669 = vpop.f32.mrf.mxu0
        %670 = vmatprep.mubr.f32.mxu0 %v491
        %671 = vmatmul.mubr.f32.gmra.mxu0 %v490
        %v672 = vpop.f32.mrf.mxu0
        %v673 = vadd.f32 0.0, %v672
        %v674 = vpop.f32.mrf.mxu0
        %675 = vmatprep.mubr.f32.mxu0 %v493
        %676 = vmatmul.mubr.f32.gmra.mxu0 %v492
        %v677 = vpop.f32.mrf.mxu0
        %v678 = vadd.f32 0.0, %v677
        %v679 = vpop.f32.mrf.mxu0
        %680 = vmatprep.mubr.f32.mxu0 %v495
        %681 = vmatmul.mubr.f32.gmra.mxu0 %v494
        %v682 = vpop.f32.mrf.mxu0
        %v683 = vadd.f32 0.0, %v682
        %v684 = vpop.f32.mrf.mxu0
        %685 = vmatprep.mubr.f32.mxu0 %v497
        %686 = vmatmul.mubr.f32.gmra.mxu0 %v496
        %v687 = vpop.f32.mrf.mxu0
        %v688 = vadd.f32 0.0, %v687
        %v689 = vpop.f32.mrf.mxu0
        %690 = vmatprep.mubr.f32.mxu0 %v499
        %691 = vmatmul.mubr.f32.gmra.mxu0 %v498
        %v692 = vpop.f32.mrf.mxu0
        %v693 = vadd.f32 0.0, %v692
        %v694 = vpop.f32.mrf.mxu0
        %695 = vmatprep.mubr.f32.mxu0 %v501
        %696 = vmatmul.mubr.f32.gmra.mxu0 %v500
        %v697 = vpop.f32.mrf.mxu0
        %v698 = vadd.f32 0.0, %v697
        %v699 = vpop.f32.mrf.mxu0
        %700 = vmatprep.mubr.f32.mxu0 %v503
        %701 = vmatmul.mubr.f32.gmra.mxu0 %v502
        %v702 = vpop.f32.mrf.mxu0
        %v703 = vadd.f32 0.0, %v702
        %v704 = vpop.f32.mrf.mxu0
        %705 = vmatprep.mubr.f32.mxu0 %v505
        %706 = vmatmul.mubr.f32.gmra.mxu0 %v504
        %v707 = vpop.f32.mrf.mxu0
        %v708 = vadd.f32 0.0, %v707
        %v709 = vpop.f32.mrf.mxu0
        %710 = vmatprep.mubr.f32.mxu0 %v507
        %711 = vmatmul.mubr.f32.gmra.mxu0 %v506
        %v712 = vpop.f32.mrf.mxu0
        %v713 = vadd.f32 0.0, %v712
        %v714 = vpop.f32.mrf.mxu0
        %715 = vmatprep.mubr.f32.mxu0 %v509
        %716 = vmatmul.mubr.f32.gmra.mxu0 %v508
        %v717 = vpop.f32.mrf.mxu0
        %v718 = vadd.f32 0.0, %v717
        %v719 = vpop.f32.mrf.mxu0
        %720 = vmatprep.mubr.f32.mxu0 %v511
        %721 = vmatmul.mubr.f32.gmra.mxu0 %v510
        %v722 = vpop.f32.mrf.mxu0
        %v723 = vadd.f32 0.0, %v722
        %v724 = vpop.f32.mrf.mxu0
        %725 = vmatprep.mubr.f32.mxu0 %v513
        %726 = vmatmul.mubr.f32.gmra.mxu0 %v512
        %v727 = vpop.f32.mrf.mxu0
        %v728 = vadd.f32 0.0, %v727
        %v729 = vpop.f32.mrf.mxu0
        %730 = vmatprep.mubr.f32.mxu0 %v515
        %731 = vmatmul.mubr.f32.gmra.mxu0 %v514
        %v732 = vpop.f32.mrf.mxu0
        %v733 = vadd.f32 0.0, %v732
        %v734 = vpop.f32.mrf.mxu0
        %735 = vmatprep.mubr.f32.mxu0 %v517
        %736 = vmatmul.mubr.f32.gmra.mxu0 %v516
        %v737 = vpop.f32.mrf.mxu0
        %v738 = vadd.f32 0.0, %v737
        %v739 = vpop.f32.mrf.mxu0
        %740 = vmatprep.mubr.f32.mxu0 %v519
        %741 = vmatmul.mubr.f32.gmra.mxu0 %v518
        %v742 = vpop.f32.mrf.mxu0
        %v743 = vadd.f32 0.0, %v742
        %v744 = vpop.f32.mrf.mxu0
        %745 = vmatprep.mubr.f32.mxu0 %v521
        %746 = vmatmul.mubr.f32.gmra.mxu0 %v520
        %v747 = vpop.f32.mrf.mxu0
        %v748 = vadd.f32 0.0, %v747
        %v749 = vpop.f32.mrf.mxu0
        %750 = vdwg.mxu0
        %783 = vrot.lane.b32.xlu0 %v426, 8
        %v784 = vpop.permute.xlu0 %783
        %785 = vrot.lane.b32.xlu0 %v427, 8
        %v786 = vpop.permute.xlu0 %785
        %787 = vrot.lane.b32.xlu0 %v428, 8
        %v788 = vpop.permute.xlu0 %787
        %789 = vrot.lane.b32.xlu0 %v429, 8
        %v790 = vpop.permute.xlu0 %789
        %791 = vrot.lane.b32.xlu0 %v430, 8
        %v792 = vpop.permute.xlu0 %791
        %793 = vrot.lane.b32.xlu0 %v431, 8
        %v794 = vpop.permute.xlu0 %793
        %795 = vrot.lane.b32.xlu0 %v432, 8
        %v796 = vpop.permute.xlu0 %795
        %797 = vrot.lane.b32.xlu0 %v433, 8
        %v798 = vpop.permute.xlu0 %797
        %799 = vrot.lane.b32.xlu0 %v434, 8
        %v800 = vpop.permute.xlu0 %799
        %801 = vrot.lane.b32.xlu0 %v435, 8
        %v802 = vpop.permute.xlu0 %801
        %803 = vrot.lane.b32.xlu0 %v436, 8
        %v804 = vpop.permute.xlu0 %803
        %805 = vrot.lane.b32.xlu0 %v437, 8
        %v806 = vpop.permute.xlu0 %805
        %807 = vrot.lane.b32.xlu0 %v438, 8
        %v808 = vpop.permute.xlu0 %807
        %809 = vrot.lane.b32.xlu0 %v439, 8
        %v810 = vpop.permute.xlu0 %809
        %811 = vrot.lane.b32.xlu0 %v440, 8
        %v812 = vpop.permute.xlu0 %811
        %813 = vrot.lane.b32.xlu0 %v441, 8
        %v814 = vpop.permute.xlu0 %813
        %815 = vrot.lane.b32.xlu0 %v442, 8
        %v816 = vpop.permute.xlu0 %815
        %817 = vrot.lane.b32.xlu0 %v443, 8
        %v818 = vpop.permute.xlu0 %817
        %819 = vrot.lane.b32.xlu0 %v444, 8
        %v820 = vpop.permute.xlu0 %819
        %821 = vrot.lane.b32.xlu0 %v445, 8
        %v822 = vpop.permute.xlu0 %821
        %823 = vrot.lane.b32.xlu0 %v446, 8
        %v824 = vpop.permute.xlu0 %823
        %825 = vrot.lane.b32.xlu0 %v447, 8
        %v826 = vpop.permute.xlu0 %825
        %827 = vrot.lane.b32.xlu0 %v448, 8
        %v828 = vpop.permute.xlu0 %827
        %829 = vrot.lane.b32.xlu0 %v449, 8
        %v830 = vpop.permute.xlu0 %829
        %831 = vrot.lane.b32.xlu0 %v450, 8
        %v832 = vpop.permute.xlu0 %831
        %833 = vrot.lane.b32.xlu0 %v451, 8
        %v834 = vpop.permute.xlu0 %833
        %835 = vrot.lane.b32.xlu0 %v452, 8
        %v836 = vpop.permute.xlu0 %835
        %837 = vrot.lane.b32.xlu0 %v453, 8
        %v838 = vpop.permute.xlu0 %837
        %839 = vrot.lane.b32.xlu0 %v454, 8
        %v840 = vpop.permute.xlu0 %839
        %841 = vrot.lane.b32.xlu0 %v455, 8
        %v842 = vpop.permute.xlu0 %841
        %843 = vrot.lane.b32.xlu0 %v456, 8
        %v844 = vpop.permute.xlu0 %843
        %845 = vrot.lane.b32.xlu0 %v457, 8
        %v846 = vpop.permute.xlu0 %845
        %vm879 = vcmask 64512
        %v880 = vsel %vm879, %v593, %v784
        %v881 = vsel %vm879, %v598, %v786
        %v882 = vsel %vm879, %v603, %v788
        %v883 = vsel %vm879, %v608, %v790
        %v884 = vsel %vm879, %v613, %v792
        %v885 = vsel %vm879, %v618, %v794
        %v886 = vsel %vm879, %v623, %v796
        %v887 = vsel %vm879, %v628, %v798
        %v888 = vsel %vm879, %v633, %v800
        %v889 = vsel %vm879, %v638, %v802
        %v890 = vsel %vm879, %v643, %v804
        %v891 = vsel %vm879, %v648, %v806
        %v892 = vsel %vm879, %v653, %v808
        %v893 = vsel %vm879, %v658, %v810
        %v894 = vsel %vm879, %v663, %v812
        %v895 = vsel %vm879, %v668, %v814
        %v896 = vsel %vm879, %v673, %v816
        %v897 = vsel %vm879, %v678, %v818
        %v898 = vsel %vm879, %v683, %v820
        %v899 = vsel %vm879, %v688, %v822
        %v900 = vsel %vm879, %v693, %v824
        %v901 = vsel %vm879, %v698, %v826
        %v902 = vsel %vm879, %v703, %v828
        %v903 = vsel %vm879, %v708, %v830
        %v904 = vsel %vm879, %v713, %v832
        %v905 = vsel %vm879, %v718, %v834
        %v906 = vsel %vm879, %v723, %v836
        %v907 = vsel %vm879, %v728, %v838
        %v908 = vsel %vm879, %v733, %v840
        %v909 = vsel %vm879, %v738, %v842
        %v910 = vsel %vm879, %v743, %v844
        %v911 = vsel %vm879, %v748, %v846
        %v912 = vpack.c.bf16 %v881, %v880
        %v913 = vpack.c.bf16 %v883, %v882
        %v914 = vpack.c.bf16 %v885, %v884
        %v915 = vpack.c.bf16 %v887, %v886
        %v916 = vpack.c.bf16 %v889, %v888
        %v917 = vpack.c.bf16 %v891, %v890
        %v918 = vpack.c.bf16 %v893, %v892
        %v919 = vpack.c.bf16 %v895, %v894
        %v920 = vpack.c.bf16 %v897, %v896
        %v921 = vpack.c.bf16 %v899, %v898
        %v922 = vpack.c.bf16 %v901, %v900
        %v923 = vpack.c.bf16 %v903, %v902
        %v924 = vpack.c.bf16 %v905, %v904
        %v925 = vpack.c.bf16 %v907, %v906
        %v926 = vpack.c.bf16 %v909, %v908
        %v927 = vpack.c.bf16 %v911, %v910
        %v928 = vld [vmem:[%s3] sm:$0xf]
        %v929 = vld [vmem:[%s3 + $0x4] sm:$0xf]
        %v930 = vld [vmem:[%s4] sm:$0x1]
        %v932 = vlaneseq
        %v933 = vshrl.u32 %v932, 7
        %v934 = vsub.s32 0, %v933
        %v935 = vrot.slane %v930, %v934
        %v939 = vunpack.c.l.b16 %v928
        %v940 = vunpack.c.l.b16 %v929
        %v941 = vpack.c.b16 %v940, %v939
        %vm943 = vcmask 130048
        %v945 = vsel %vm943, %v912, 0
        %v948 = vsel %vm943, %v913, 0
        %v951 = vsel %vm943, %v914, 0
        %v954 = vsel %vm943, %v915, 0
        %v957 = vsel %vm943, %v916, 0
        %v960 = vsel %vm943, %v917, 0
        %v963 = vsel %vm943, %v918, 0
        %v966 = vsel %vm943, %v919, 0
        %v969 = vsel %vm943, %v920, 0
        %v972 = vsel %vm943, %v921, 0
        %v975 = vsel %vm943, %v922, 0
        %v978 = vsel %vm943, %v923, 0
        %v981 = vsel %vm943, %v924, 0
        %v984 = vsel %vm943, %v925, 0
        %v987 = vsel %vm943, %v926, 0
        %v990 = vsel %vm943, %v927, 0
        %992 = vmatprep.subr.bf16.mxu0 0
        %993 = vmatpush1.bf16.msra.mxu0 0
        %994 = vmatprep.subr.bf16.mxu0 0
        %995 = vmatpush1.bf16.msra.mxu0 0
        %996 = vmatprep.subr.bf16.mxu0 0
        %997 = vmatpush1.bf16.msra.mxu0 0
        %998 = vmatprep.subr.bf16.mxu0 0
        %999 = vmatpush1.bf16.msra.mxu0 0
        %1000 = vmatprep.subr.bf16.mxu0 0
        %1001 = vmatpush1.bf16.msra.mxu0 0
        %1002 = vmatprep.subr.bf16.mxu0 0
        %1003 = vmatpush1.bf16.msra.mxu0 0
        %1004 = vmatprep.subr.bf16.mxu0 0
        %1005 = vmatpush1.bf16.msra.mxu0 0
        %1006 = vmatprep.subr.bf16.mxu0 0
        %1007 = vmatpush1.bf16.msra.mxu0 %v941
        %1008 = vmatprep.subr.bf16.mxu0 0
        %1009 = vmatpush2.bf16.msra.mxu0 0
        %1010 = vmatprep.subr.bf16.mxu0 0
        %1011 = vmatpush2.bf16.msra.mxu0 0
        %1012 = vmatprep.subr.bf16.mxu0 0
        %1013 = vmatpush2.bf16.msra.mxu0 0
        %1014 = vmatprep.subr.bf16.mxu0 0
        %1015 = vmatpush2.bf16.msra.mxu0 0
        %1016 = vmatprep.subr.bf16.mxu0 0
        %1017 = vmatpush2.bf16.msra.mxu0 0
        %1018 = vmatprep.subr.bf16.mxu0 0
        %1019 = vmatpush2.bf16.msra.mxu0 0
        %1020 = vmatprep.subr.bf16.mxu0 0
        %1021 = vmatpush2.bf16.msra.mxu0 0
        %1022 = vmatprep.subr.bf16.mxu0 0
        %1023 = vmatpush2.bf16.msra.mxu0 0
        %1024 = vmatprep.mubr.bf16.mxu0 0
        %1025 = vmatmul.mubr.bf16.gmra.mxu0 %v945
        %v1026 = vpop.f32.mrf.mxu0
        %v1027 = vadd.f32 %v935, %v1026
        %v1028 = vpop.f32.mrf.mxu0
        %v1029 = vpop.f32.mrf.mxu0
        %v1030 = vadd.f32 %v935, %v1029
        %v1031 = vpop.f32.mrf.mxu0
        %1032 = vmatprep.mubr.bf16.mxu0 0
        %1033 = vmatmul.mubr.bf16.gmra.mxu0 %v948
        %v1034 = vpop.f32.mrf.mxu0
        %v1035 = vadd.f32 %v935, %v1034
        %v1036 = vpop.f32.mrf.mxu0
        %v1037 = vpop.f32.mrf.mxu0
        %v1038 = vadd.f32 %v935, %v1037
        %v1039 = vpop.f32.mrf.mxu0
        %1040 = vmatprep.mubr.bf16.mxu0 0
        %1041 = vmatmul.mubr.bf16.gmra.mxu0 %v951
        %v1042 = vpop.f32.mrf.mxu0
        %v1043 = vadd.f32 %v935, %v1042
        %v1044 = vpop.f32.mrf.mxu0
        %v1045 = vpop.f32.mrf.mxu0
        %v1046 = vadd.f32 %v935, %v1045
        %v1047 = vpop.f32.mrf.mxu0
        %1048 = vmatprep.mubr.bf16.mxu0 0
        %1049 = vmatmul.mubr.bf16.gmra.mxu0 %v954
        %v1050 = vpop.f32.mrf.mxu0
        %v1051 = vadd.f32 %v935, %v1050
        %v1052 = vpop.f32.mrf.mxu0
        %v1053 = vpop.f32.mrf.mxu0
        %v1054 = vadd.f32 %v935, %v1053
        %v1055 = vpop.f32.mrf.mxu0
        %1056 = vmatprep.mubr.bf16.mxu0 0
        %1057 = vmatmul.mubr.bf16.gmra.mxu0 %v957
        %v1058 = vpop.f32.mrf.mxu0
        %v1059 = vadd.f32 %v935, %v1058
        %v1060 = vpop.f32.mrf.mxu0
        %v1061 = vpop.f32.mrf.mxu0
        %v1062 = vadd.f32 %v935, %v1061
        %v1063 = vpop.f32.mrf.mxu0
        %1064 = vmatprep.mubr.bf16.mxu0 0
        %1065 = vmatmul.mubr.bf16.gmra.mxu0 %v960
        %v1066 = vpop.f32.mrf.mxu0
        %v1067 = vadd.f32 %v935, %v1066
        %v1068 = vpop.f32.mrf.mxu0
        %v1069 = vpop.f32.mrf.mxu0
        %v1070 = vadd.f32 %v935, %v1069
        %v1071 = vpop.f32.mrf.mxu0
        %1072 = vmatprep.mubr.bf16.mxu0 0
        %1073 = vmatmul.mubr.bf16.gmra.mxu0 %v963
        %v1074 = vpop.f32.mrf.mxu0
        %v1075 = vadd.f32 %v935, %v1074
        %v1076 = vpop.f32.mrf.mxu0
        %v1077 = vpop.f32.mrf.mxu0
        %v1078 = vadd.f32 %v935, %v1077
        %v1079 = vpop.f32.mrf.mxu0
        %1080 = vmatprep.mubr.bf16.mxu0 0
        %1081 = vmatmul.mubr.bf16.gmra.mxu0 %v966
        %v1082 = vpop.f32.mrf.mxu0
        %v1083 = vadd.f32 %v935, %v1082
        %v1084 = vpop.f32.mrf.mxu0
        %v1085 = vpop.f32.mrf.mxu0
        %v1086 = vadd.f32 %v935, %v1085
        %v1087 = vpop.f32.mrf.mxu0
        %1088 = vmatprep.mubr.bf16.mxu0 0
        %1089 = vmatmul.mubr.bf16.gmra.mxu0 %v969
        %v1090 = vpop.f32.mrf.mxu0
        %v1091 = vadd.f32 %v935, %v1090
        %v1092 = vpop.f32.mrf.mxu0
        %v1093 = vpop.f32.mrf.mxu0
        %v1094 = vadd.f32 %v935, %v1093
        %v1095 = vpop.f32.mrf.mxu0
        %1096 = vmatprep.mubr.bf16.mxu0 0
        %1097 = vmatmul.mubr.bf16.gmra.mxu0 %v972
        %v1098 = vpop.f32.mrf.mxu0
        %v1099 = vadd.f32 %v935, %v1098
        %v1100 = vpop.f32.mrf.mxu0
        %v1101 = vpop.f32.mrf.mxu0
        %v1102 = vadd.f32 %v935, %v1101
        %v1103 = vpop.f32.mrf.mxu0
        %1104 = vmatprep.mubr.bf16.mxu0 0
        %1105 = vmatmul.mubr.bf16.gmra.mxu0 %v975
        %v1106 = vpop.f32.mrf.mxu0
        %v1107 = vadd.f32 %v935, %v1106
        %v1108 = vpop.f32.mrf.mxu0
        %v1109 = vpop.f32.mrf.mxu0
        %v1110 = vadd.f32 %v935, %v1109
        %v1111 = vpop.f32.mrf.mxu0
        %1112 = vmatprep.mubr.bf16.mxu0 0
        %1113 = vmatmul.mubr.bf16.gmra.mxu0 %v978
        %v1114 = vpop.f32.mrf.mxu0
        %v1115 = vadd.f32 %v935, %v1114
        %v1116 = vpop.f32.mrf.mxu0
        %v1117 = vpop.f32.mrf.mxu0
        %v1118 = vadd.f32 %v935, %v1117
        %v1119 = vpop.f32.mrf.mxu0
        %1120 = vmatprep.mubr.bf16.mxu0 0
        %1121 = vmatmul.mubr.bf16.gmra.mxu0 %v981
        %v1122 = vpop.f32.mrf.mxu0
        %v1123 = vadd.f32 %v935, %v1122
        %v1124 = vpop.f32.mrf.mxu0
        %v1125 = vpop.f32.mrf.mxu0
        %v1126 = vadd.f32 %v935, %v1125
        %v1127 = vpop.f32.mrf.mxu0
        %1128 = vmatprep.mubr.bf16.mxu0 0
        %1129 = vmatmul.mubr.bf16.gmra.mxu0 %v984
        %v1130 = vpop.f32.mrf.mxu0
        %v1131 = vadd.f32 %v935, %v1130
        %v1132 = vpop.f32.mrf.mxu0
        %v1133 = vpop.f32.mrf.mxu0
        %v1134 = vadd.f32 %v935, %v1133
        %v1135 = vpop.f32.mrf.mxu0
        %1136 = vmatprep.mubr.bf16.mxu0 0
        %1137 = vmatmul.mubr.bf16.gmra.mxu0 %v987
        %v1138 = vpop.f32.mrf.mxu0
        %v1139 = vadd.f32 %v935, %v1138
        %v1140 = vpop.f32.mrf.mxu0
        %v1141 = vpop.f32.mrf.mxu0
        %v1142 = vadd.f32 %v935, %v1141
        %v1143 = vpop.f32.mrf.mxu0
        %1144 = vmatprep.mubr.bf16.mxu0 0
        %1145 = vmatmul.mubr.bf16.gmra.mxu0 %v990
        %v1146 = vpop.f32.mrf.mxu0
        %v1147 = vadd.f32 %v935, %v1146
        %v1148 = vpop.f32.mrf.mxu0
        %v1149 = vpop.f32.mrf.mxu0
        %v1150 = vadd.f32 %v935, %v1149
        %v1151 = vpop.f32.mrf.mxu0
        %1152 = vdwg.mxu0
        %v1153 = vmax.f32 %v1027, 0.0
        %v1154 = vmax.f32 %v1030, 0.0
        %v1155 = vmax.f32 %v1035, 0.0
        %v1156 = vmax.f32 %v1038, 0.0
        %v1157 = vmax.f32 %v1043, 0.0
        %v1158 = vmax.f32 %v1046, 0.0
        %v1159 = vmax.f32 %v1051, 0.0
        %v1160 = vmax.f32 %v1054, 0.0
        %v1161 = vmax.f32 %v1059, 0.0
        %v1162 = vmax.f32 %v1062, 0.0
        %v1163 = vmax.f32 %v1067, 0.0
        %v1164 = vmax.f32 %v1070, 0.0
        %v1165 = vmax.f32 %v1075, 0.0
        %v1166 = vmax.f32 %v1078, 0.0
        %v1167 = vmax.f32 %v1083, 0.0
        %v1168 = vmax.f32 %v1086, 0.0
        %v1169 = vmax.f32 %v1091, 0.0
        %v1170 = vmax.f32 %v1094, 0.0
        %v1171 = vmax.f32 %v1099, 0.0
        %v1172 = vmax.f32 %v1102, 0.0
        %v1173 = vmax.f32 %v1107, 0.0
        %v1174 = vmax.f32 %v1110, 0.0
        %v1175 = vmax.f32 %v1115, 0.0
        %v1176 = vmax.f32 %v1118, 0.0
        %v1177 = vmax.f32 %v1123, 0.0
        %v1178 = vmax.f32 %v1126, 0.0
        %v1179 = vmax.f32 %v1131, 0.0
        %v1180 = vmax.f32 %v1134, 0.0
        %v1181 = vmax.f32 %v1139, 0.0
        %v1182 = vmax.f32 %v1142, 0.0
        %v1183 = vmax.f32 %v1147, 0.0
        %v1184 = vmax.f32 %v1150, 0.0
        %v1185 = vpack.c.bf16 %v1154, %v1153
        %v1186 = vpack.c.bf16 %v1156, %v1155
        %v1187 = vpack.c.bf16 %v1158, %v1157
        %v1188 = vpack.c.bf16 %v1160, %v1159
        %v1189 = vpack.c.bf16 %v1162, %v1161
        %v1190 = vpack.c.bf16 %v1164, %v1163
        %v1191 = vpack.c.bf16 %v1166, %v1165
        %v1192 = vpack.c.bf16 %v1168, %v1167
        %v1193 = vpack.c.bf16 %v1170, %v1169
        %v1194 = vpack.c.bf16 %v1172, %v1171
        %v1195 = vpack.c.bf16 %v1174, %v1173
        %v1196 = vpack.c.bf16 %v1176, %v1175
        %v1197 = vpack.c.bf16 %v1178, %v1177
        %v1198 = vpack.c.bf16 %v1180, %v1179
        %v1199 = vpack.c.bf16 %v1182, %v1181
        %v1200 = vpack.c.bf16 %v1184, %v1183
        %v1201 = vld [vmem:[%s5] sm:$0xf]
        %v1202 = vld [vmem:[%s5 + $0x4] sm:$0xf]
        %v1203 = vld [vmem:[%s5 + $0x8] sm:$0xf]
        %v1204 = vld [vmem:[%s5 + $0xc] sm:$0xf]
        %v1205 = vld [vmem:[%s6] sm:$0x1]
        %v1207 = vlaneseq
        %v1208 = vshrl.u32 %v1207, 7
        %v1209 = vsub.s32 0, %v1208
        %v1210 = vrot.slane %v1205, %v1209
        %v1216 = vunpack.c.l.b16 %v1201
        %v1217 = vunpack.c.l.b16 %v1202
        %v1218 = vunpack.c.l.b16 %v1203
        %v1219 = vunpack.c.l.b16 %v1204
        %v1220 = vpack.c.b16 %v1217, %v1216
        %v1221 = vpack.c.b16 %v1219, %v1218
        %vm1224 = vcmask 261120
        %v1226 = vsel %vm1224, %v1185, 0
        %v1229 = vsel %vm1224, %v1186, 0
        %v1232 = vsel %vm1224, %v1187, 0
        %v1235 = vsel %vm1224, %v1188, 0
        %v1238 = vsel %vm1224, %v1189, 0
        %v1241 = vsel %vm1224, %v1190, 0
        %v1244 = vsel %vm1224, %v1191, 0
        %v1247 = vsel %vm1224, %v1192, 0
        %v1250 = vsel %vm1224, %v1193, 0
        %v1253 = vsel %vm1224, %v1194, 0
        %v1256 = vsel %vm1224, %v1195, 0
        %v1259 = vsel %vm1224, %v1196, 0
        %v1262 = vsel %vm1224, %v1197, 0
        %v1265 = vsel %vm1224, %v1198, 0
        %v1268 = vsel %vm1224, %v1199, 0
        %v1271 = vsel %vm1224, %v1200, 0
        %1273 = vmatprep.subr.bf16.mxu0 0
        %1274 = vmatpush1.bf16.msra.mxu0 0
        %1275 = vmatprep.subr.bf16.mxu0 0
        %1276 = vmatpush1.bf16.msra.mxu0 0
        %1277 = vmatprep.subr.bf16.mxu0 0
        %1278 = vmatpush1.bf16.msra.mxu0 0
        %1279 = vmatprep.subr.bf16.mxu0 0
        %1280 = vmatpush1.bf16.msra.mxu0 0
        %1281 = vmatprep.subr.bf16.mxu0 0
        %1282 = vmatpush1.bf16.msra.mxu0 0
        %1283 = vmatprep.subr.bf16.mxu0 0
        %1284 = vmatpush1.bf16.msra.mxu0 0
        %1285 = vmatprep.subr.bf16.mxu0 0
        %1286 = vmatpush1.bf16.msra.mxu0 %v1221
        %1287 = vmatprep.subr.bf16.mxu0 0
        %1288 = vmatpush1.bf16.msra.mxu0 %v1220
        %1289 = vmatprep.subr.bf16.mxu0 0
        %1290 = vmatpush2.bf16.msra.mxu0 0
        %1291 = vmatprep.subr.bf16.mxu0 0
        %1292 = vmatpush2.bf16.msra.mxu0 0
        %1293 = vmatprep.subr.bf16.mxu0 0
        %1294 = vmatpush2.bf16.msra.mxu0 0
        %1295 = vmatprep.subr.bf16.mxu0 0
        %1296 = vmatpush2.bf16.msra.mxu0 0
        %1297 = vmatprep.subr.bf16.mxu0 0
        %1298 = vmatpush2.bf16.msra.mxu0 0
        %1299 = vmatprep.subr.bf16.mxu0 0
        %1300 = vmatpush2.bf16.msra.mxu0 0
        %1301 = vmatprep.subr.bf16.mxu0 0
        %1302 = vmatpush2.bf16.msra.mxu0 0
        %1303 = vmatprep.subr.bf16.mxu0 0
        %1304 = vmatpush2.bf16.msra.mxu0 0
        %1305 = vmatprep.mubr.bf16.mxu0 0
        %1306 = vmatmul.mubr.bf16.gmra.mxu0 %v1226
        %v1307 = vpop.f32.mrf.mxu0
        %v1308 = vadd.f32 %v1210, %v1307
        %v1309 = vpop.f32.mrf.mxu0
        %v1310 = vpop.f32.mrf.mxu0
        %v1311 = vadd.f32 %v1210, %v1310
        %v1312 = vpop.f32.mrf.mxu0
        %1313 = vmatprep.mubr.bf16.mxu0 0
        %1314 = vmatmul.mubr.bf16.gmra.mxu0 %v1229
        %v1315 = vpop.f32.mrf.mxu0
        %v1316 = vadd.f32 %v1210, %v1315
        %v1317 = vpop.f32.mrf.mxu0
        %v1318 = vpop.f32.mrf.mxu0
        %v1319 = vadd.f32 %v1210, %v1318
        %v1320 = vpop.f32.mrf.mxu0
        %1321 = vmatprep.mubr.bf16.mxu0 0
        %1322 = vmatmul.mubr.bf16.gmra.mxu0 %v1232
        %v1323 = vpop.f32.mrf.mxu0
        %v1324 = vadd.f32 %v1210, %v1323
        %v1325 = vpop.f32.mrf.mxu0
        %v1326 = vpop.f32.mrf.mxu0
        %v1327 = vadd.f32 %v1210, %v1326
        %v1328 = vpop.f32.mrf.mxu0
        %1329 = vmatprep.mubr.bf16.mxu0 0
        %1330 = vmatmul.mubr.bf16.gmra.mxu0 %v1235
        %v1331 = vpop.f32.mrf.mxu0
        %v1332 = vadd.f32 %v1210, %v1331
        %v1333 = vpop.f32.mrf.mxu0
        %v1334 = vpop.f32.mrf.mxu0
        %v1335 = vadd.f32 %v1210, %v1334
        %v1336 = vpop.f32.mrf.mxu0
        %1337 = vmatprep.mubr.bf16.mxu0 0
        %1338 = vmatmul.mubr.bf16.gmra.mxu0 %v1238
        %v1339 = vpop.f32.mrf.mxu0
        %v1340 = vadd.f32 %v1210, %v1339
        %v1341 = vpop.f32.mrf.mxu0
        %v1342 = vpop.f32.mrf.mxu0
        %v1343 = vadd.f32 %v1210, %v1342
        %v1344 = vpop.f32.mrf.mxu0
        %1345 = vmatprep.mubr.bf16.mxu0 0
        %1346 = vmatmul.mubr.bf16.gmra.mxu0 %v1241
        %v1347 = vpop.f32.mrf.mxu0
        %v1348 = vadd.f32 %v1210, %v1347
        %v1349 = vpop.f32.mrf.mxu0
        %v1350 = vpop.f32.mrf.mxu0
        %v1351 = vadd.f32 %v1210, %v1350
        %v1352 = vpop.f32.mrf.mxu0
        %1353 = vmatprep.mubr.bf16.mxu0 0
        %1354 = vmatmul.mubr.bf16.gmra.mxu0 %v1244
        %v1355 = vpop.f32.mrf.mxu0
        %v1356 = vadd.f32 %v1210, %v1355
        %v1357 = vpop.f32.mrf.mxu0
        %v1358 = vpop.f32.mrf.mxu0
        %v1359 = vadd.f32 %v1210, %v1358
        %v1360 = vpop.f32.mrf.mxu0
        %1361 = vmatprep.mubr.bf16.mxu0 0
        %1362 = vmatmul.mubr.bf16.gmra.mxu0 %v1247
        %v1363 = vpop.f32.mrf.mxu0
        %v1364 = vadd.f32 %v1210, %v1363
        %v1365 = vpop.f32.mrf.mxu0
        %v1366 = vpop.f32.mrf.mxu0
        %v1367 = vadd.f32 %v1210, %v1366
        %v1368 = vpop.f32.mrf.mxu0
        %1369 = vmatprep.mubr.bf16.mxu0 0
        %1370 = vmatmul.mubr.bf16.gmra.mxu0 %v1250
        %v1371 = vpop.f32.mrf.mxu0
        %v1372 = vadd.f32 %v1210, %v1371
        %v1373 = vpop.f32.mrf.mxu0
        %v1374 = vpop.f32.mrf.mxu0
        %v1375 = vadd.f32 %v1210, %v1374
        %v1376 = vpop.f32.mrf.mxu0
        %1377 = vmatprep.mubr.bf16.mxu0 0
        %1378 = vmatmul.mubr.bf16.gmra.mxu0 %v1253
        %v1379 = vpop.f32.mrf.mxu0
        %v1380 = vadd.f32 %v1210, %v1379
        %v1381 = vpop.f32.mrf.mxu0
        %v1382 = vpop.f32.mrf.mxu0
        %v1383 = vadd.f32 %v1210, %v1382
        %v1384 = vpop.f32.mrf.mxu0
        %1385 = vmatprep.mubr.bf16.mxu0 0
        %1386 = vmatmul.mubr.bf16.gmra.mxu0 %v1256
        %v1387 = vpop.f32.mrf.mxu0
        %v1388 = vadd.f32 %v1210, %v1387
        %v1389 = vpop.f32.mrf.mxu0
        %v1390 = vpop.f32.mrf.mxu0
        %v1391 = vadd.f32 %v1210, %v1390
        %v1392 = vpop.f32.mrf.mxu0
        %1393 = vmatprep.mubr.bf16.mxu0 0
        %1394 = vmatmul.mubr.bf16.gmra.mxu0 %v1259
        %v1395 = vpop.f32.mrf.mxu0
        %v1396 = vadd.f32 %v1210, %v1395
        %v1397 = vpop.f32.mrf.mxu0
        %v1398 = vpop.f32.mrf.mxu0
        %v1399 = vadd.f32 %v1210, %v1398
        %v1400 = vpop.f32.mrf.mxu0
        %1401 = vmatprep.mubr.bf16.mxu0 0
        %1402 = vmatmul.mubr.bf16.gmra.mxu0 %v1262
        %v1403 = vpop.f32.mrf.mxu0
        %v1404 = vadd.f32 %v1210, %v1403
        %v1405 = vpop.f32.mrf.mxu0
        %v1406 = vpop.f32.mrf.mxu0
        %v1407 = vadd.f32 %v1210, %v1406
        %v1408 = vpop.f32.mrf.mxu0
        %1409 = vmatprep.mubr.bf16.mxu0 0
        %1410 = vmatmul.mubr.bf16.gmra.mxu0 %v1265
        %v1411 = vpop.f32.mrf.mxu0
        %v1412 = vadd.f32 %v1210, %v1411
        %v1413 = vpop.f32.mrf.mxu0
        %v1414 = vpop.f32.mrf.mxu0
        %v1415 = vadd.f32 %v1210, %v1414
        %v1416 = vpop.f32.mrf.mxu0
        %1417 = vmatprep.mubr.bf16.mxu0 0
        %1418 = vmatmul.mubr.bf16.gmra.mxu0 %v1268
        %v1419 = vpop.f32.mrf.mxu0
        %v1420 = vadd.f32 %v1210, %v1419
        %v1421 = vpop.f32.mrf.mxu0
        %v1422 = vpop.f32.mrf.mxu0
        %v1423 = vadd.f32 %v1210, %v1422
        %v1424 = vpop.f32.mrf.mxu0
        %1425 = vmatprep.mubr.bf16.mxu0 0
        %1426 = vmatmul.mubr.bf16.gmra.mxu0 %v1271
        %v1427 = vpop.f32.mrf.mxu0
        %v1428 = vadd.f32 %v1210, %v1427
        %v1429 = vpop.f32.mrf.mxu0
        %v1430 = vpop.f32.mrf.mxu0
        %v1431 = vadd.f32 %v1210, %v1430
        %v1432 = vpop.f32.mrf.mxu0
        %1433 = vdwg.mxu0
        %v1434 = vmax.f32 %v1308, 0.0
        %v1435 = vmax.f32 %v1311, 0.0
        %v1436 = vmax.f32 %v1316, 0.0
        %v1437 = vmax.f32 %v1319, 0.0
        %v1438 = vmax.f32 %v1324, 0.0
        %v1439 = vmax.f32 %v1327, 0.0
        %v1440 = vmax.f32 %v1332, 0.0
        %v1441 = vmax.f32 %v1335, 0.0
        %v1442 = vmax.f32 %v1340, 0.0
        %v1443 = vmax.f32 %v1343, 0.0
        %v1444 = vmax.f32 %v1348, 0.0
        %v1445 = vmax.f32 %v1351, 0.0
        %v1446 = vmax.f32 %v1356, 0.0
        %v1447 = vmax.f32 %v1359, 0.0
        %v1448 = vmax.f32 %v1364, 0.0
        %v1449 = vmax.f32 %v1367, 0.0
        %v1450 = vmax.f32 %v1372, 0.0
        %v1451 = vmax.f32 %v1375, 0.0
        %v1452 = vmax.f32 %v1380, 0.0
        %v1453 = vmax.f32 %v1383, 0.0
        %v1454 = vmax.f32 %v1388, 0.0
        %v1455 = vmax.f32 %v1391, 0.0
        %v1456 = vmax.f32 %v1396, 0.0
        %v1457 = vmax.f32 %v1399, 0.0
        %v1458 = vmax.f32 %v1404, 0.0
        %v1459 = vmax.f32 %v1407, 0.0
        %v1460 = vmax.f32 %v1412, 0.0
        %v1461 = vmax.f32 %v1415, 0.0
        %v1462 = vmax.f32 %v1420, 0.0
        %v1463 = vmax.f32 %v1423, 0.0
        %v1464 = vmax.f32 %v1428, 0.0
        %v1465 = vmax.f32 %v1431, 0.0
        %1466 = vmatprep.subr.mxu0 0.0
        %1467 = vmatpush1.msra.mxu0 %v1449
        %1468 = vmatprep.subr.mxu0 0.0
        %1469 = vmatpush1.msra.mxu0 %v1448
        %1470 = vmatprep.subr.mxu0 0.0
        %1471 = vmatpush1.msra.mxu0 %v1447
        %1472 = vmatprep.subr.mxu0 0.0
        %1473 = vmatpush1.msra.mxu0 %v1446
        %1474 = vmatprep.subr.mxu0 0.0
        %1475 = vmatpush1.msra.mxu0 %v1445
        %1476 = vmatprep.subr.mxu0 0.0
        %1477 = vmatpush1.msra.mxu0 %v1444
        %1478 = vmatprep.subr.mxu0 0.0
        %1479 = vmatpush1.msra.mxu0 %v1443
        %1480 = vmatprep.subr.mxu0 0.0
        %1481 = vmatpush1.msra.mxu0 %v1442
        %1482 = vmatprep.subr.mxu0 0.0
        %1483 = vmatpush1.msra.mxu0 %v1441
        %1484 = vmatprep.subr.mxu0 0.0
        %1485 = vmatpush1.msra.mxu0 %v1440
        %1486 = vmatprep.subr.mxu0 0.0
        %1487 = vmatpush1.msra.mxu0 %v1439
        %1488 = vmatprep.subr.mxu0 0.0
        %1489 = vmatpush1.msra.mxu0 %v1438
        %1490 = vmatprep.subr.mxu0 0.0
        %1491 = vmatpush1.msra.mxu0 %v1437
        %1492 = vmatprep.subr.mxu0 0.0
        %1493 = vmatpush1.msra.mxu0 %v1436
        %1494 = vmatprep.subr.mxu0 0.0
        %1495 = vmatpush1.msra.mxu0 %v1435
        %1496 = vmatprep.subr.mxu0 0.0
        %1497 = vmatpush1.msra.mxu0 %v1434
        %1498 = vmatprep.subr.mxu0 0.0
        %1499 = vmatpush2.msra.mxu0 %v1465
        %1500 = vmatprep.subr.mxu0 0.0
        %1501 = vmatpush2.msra.mxu0 %v1464
        %1502 = vmatprep.subr.mxu0 0.0
        %1503 = vmatpush2.msra.mxu0 %v1463
        %1504 = vmatprep.subr.mxu0 0.0
        %1505 = vmatpush2.msra.mxu0 %v1462
        %1506 = vmatprep.subr.mxu0 0.0
        %1507 = vmatpush2.msra.mxu0 %v1461
        %1508 = vmatprep.subr.mxu0 0.0
        %1509 = vmatpush2.msra.mxu0 %v1460
        %1510 = vmatprep.subr.mxu0 0.0
        %1511 = vmatpush2.msra.mxu0 %v1459
        %1512 = vmatprep.subr.mxu0 0.0
        %1513 = vmatpush2.msra.mxu0 %v1458
        %1514 = vmatprep.subr.mxu0 0.0
        %1515 = vmatpush2.msra.mxu0 %v1457
        %1516 = vmatprep.subr.mxu0 0.0
        %1517 = vmatpush2.msra.mxu0 %v1456
        %1518 = vmatprep.subr.mxu0 0.0
        %1519 = vmatpush2.msra.mxu0 %v1455
        %1520 = vmatprep.subr.mxu0 0.0
        %1521 = vmatpush2.msra.mxu0 %v1454
        %1522 = vmatprep.subr.mxu0 0.0
        %1523 = vmatpush2.msra.mxu0 %v1453
        %1524 = vmatprep.subr.mxu0 0.0
        %1525 = vmatpush2.msra.mxu0 %v1452
        %1526 = vmatprep.subr.mxu0 0.0
        %1527 = vmatpush2.msra.mxu0 %v1451
        %1528 = vmatprep.subr.mxu0 0.0
        %1529 = vmatpush2.msra.mxu0 %v1450
        %1530 = vmatprep.mubr.f32.mxu0 %v459
        %1531 = vmatmul.mubr.f32.gmra.mxu0 %v458
        %v1532 = vpop.f32.mrf.mxu0
        %v1533 = vadd.f32 0.0, %v1532
        %v1534 = vpop.f32.mrf.mxu0
        %1535 = vmatprep.mubr.f32.mxu0 %v461
        %1536 = vmatmul.mubr.f32.gmra.mxu0 %v460
        %v1537 = vpop.f32.mrf.mxu0
        %v1538 = vadd.f32 0.0, %v1537
        %v1539 = vpop.f32.mrf.mxu0
        %1540 = vmatprep.mubr.f32.mxu0 %v463
        %1541 = vmatmul.mubr.f32.gmra.mxu0 %v462
        %v1542 = vpop.f32.mrf.mxu0
        %v1543 = vadd.f32 0.0, %v1542
        %v1544 = vpop.f32.mrf.mxu0
        %1545 = vmatprep.mubr.f32.mxu0 %v465
        %1546 = vmatmul.mubr.f32.gmra.mxu0 %v464
        %v1547 = vpop.f32.mrf.mxu0
        %v1548 = vadd.f32 0.0, %v1547
        %v1549 = vpop.f32.mrf.mxu0
        %1550 = vmatprep.mubr.f32.mxu0 %v467
        %1551 = vmatmul.mubr.f32.gmra.mxu0 %v466
        %v1552 = vpop.f32.mrf.mxu0
        %v1553 = vadd.f32 0.0, %v1552
        %v1554 = vpop.f32.mrf.mxu0
        %1555 = vmatprep.mubr.f32.mxu0 %v469
        %1556 = vmatmul.mubr.f32.gmra.mxu0 %v468
        %v1557 = vpop.f32.mrf.mxu0
        %v1558 = vadd.f32 0.0, %v1557
        %v1559 = vpop.f32.mrf.mxu0
        %1560 = vmatprep.mubr.f32.mxu0 %v471
        %1561 = vmatmul.mubr.f32.gmra.mxu0 %v470
        %v1562 = vpop.f32.mrf.mxu0
        %v1563 = vadd.f32 0.0, %v1562
        %v1564 = vpop.f32.mrf.mxu0
        %1565 = vmatprep.mubr.f32.mxu0 %v473
        %1566 = vmatmul.mubr.f32.gmra.mxu0 %v472
        %v1567 = vpop.f32.mrf.mxu0
        %v1568 = vadd.f32 0.0, %v1567
        %v1569 = vpop.f32.mrf.mxu0
        %1570 = vmatprep.mubr.f32.mxu0 %v475
        %1571 = vmatmul.mubr.f32.gmra.mxu0 %v474
        %v1572 = vpop.f32.mrf.mxu0
        %v1573 = vadd.f32 0.0, %v1572
        %v1574 = vpop.f32.mrf.mxu0
        %1575 = vmatprep.mubr.f32.mxu0 %v477
        %1576 = vmatmul.mubr.f32.gmra.mxu0 %v476
        %v1577 = vpop.f32.mrf.mxu0
        %v1578 = vadd.f32 0.0, %v1577
        %v1579 = vpop.f32.mrf.mxu0
        %1580 = vmatprep.mubr.f32.mxu0 %v479
        %1581 = vmatmul.mubr.f32.gmra.mxu0 %v478
        %v1582 = vpop.f32.mrf.mxu0
        %v1583 = vadd.f32 0.0, %v1582
        %v1584 = vpop.f32.mrf.mxu0
        %1585 = vmatprep.mubr.f32.mxu0 %v481
        %1586 = vmatmul.mubr.f32.gmra.mxu0 %v480
        %v1587 = vpop.f32.mrf.mxu0
        %v1588 = vadd.f32 0.0, %v1587
        %v1589 = vpop.f32.mrf.mxu0
        %1590 = vmatprep.mubr.f32.mxu0 %v483
        %1591 = vmatmul.mubr.f32.gmra.mxu0 %v482
        %v1592 = vpop.f32.mrf.mxu0
        %v1593 = vadd.f32 0.0, %v1592
        %v1594 = vpop.f32.mrf.mxu0
        %1595 = vmatprep.mubr.f32.mxu0 %v485
        %1596 = vmatmul.mubr.f32.gmra.mxu0 %v484
        %v1597 = vpop.f32.mrf.mxu0
        %v1598 = vadd.f32 0.0, %v1597
        %v1599 = vpop.f32.mrf.mxu0
        %1600 = vmatprep.mubr.f32.mxu0 %v487
        %1601 = vmatmul.mubr.f32.gmra.mxu0 %v486
        %v1602 = vpop.f32.mrf.mxu0
        %v1603 = vadd.f32 0.0, %v1602
        %v1604 = vpop.f32.mrf.mxu0
        %1605 = vmatprep.mubr.f32.mxu0 %v489
        %1606 = vmatmul.mubr.f32.gmra.mxu0 %v488
        %v1607 = vpop.f32.mrf.mxu0
        %v1608 = vadd.f32 0.0, %v1607
        %v1609 = vpop.f32.mrf.mxu0
        %1610 = vmatprep.mubr.f32.mxu0 %v491
        %1611 = vmatmul.mubr.f32.gmra.mxu0 %v490
        %v1612 = vpop.f32.mrf.mxu0
        %v1613 = vadd.f32 0.0, %v1612
        %v1614 = vpop.f32.mrf.mxu0
        %1615 = vmatprep.mubr.f32.mxu0 %v493
        %1616 = vmatmul.mubr.f32.gmra.mxu0 %v492
        %v1617 = vpop.f32.mrf.mxu0
        %v1618 = vadd.f32 0.0, %v1617
        %v1619 = vpop.f32.mrf.mxu0
        %1620 = vmatprep.mubr.f32.mxu0 %v495
        %1621 = vmatmul.mubr.f32.gmra.mxu0 %v494
        %v1622 = vpop.f32.mrf.mxu0
        %v1623 = vadd.f32 0.0, %v1622
        %v1624 = vpop.f32.mrf.mxu0
        %1625 = vmatprep.mubr.f32.mxu0 %v497
        %1626 = vmatmul.mubr.f32.gmra.mxu0 %v496
        %v1627 = vpop.f32.mrf.mxu0
        %v1628 = vadd.f32 0.0, %v1627
        %v1629 = vpop.f32.mrf.mxu0
        %1630 = vmatprep.mubr.f32.mxu0 %v499
        %1631 = vmatmul.mubr.f32.gmra.mxu0 %v498
        %v1632 = vpop.f32.mrf.mxu0
        %v1633 = vadd.f32 0.0, %v1632
        %v1634 = vpop.f32.mrf.mxu0
        %1635 = vmatprep.mubr.f32.mxu0 %v501
        %1636 = vmatmul.mubr.f32.gmra.mxu0 %v500
        %v1637 = vpop.f32.mrf.mxu0
        %v1638 = vadd.f32 0.0, %v1637
        %v1639 = vpop.f32.mrf.mxu0
        %1640 = vmatprep.mubr.f32.mxu0 %v503
        %1641 = vmatmul.mubr.f32.gmra.mxu0 %v502
        %v1642 = vpop.f32.mrf.mxu0
        %v1643 = vadd.f32 0.0, %v1642
        %v1644 = vpop.f32.mrf.mxu0
        %1645 = vmatprep.mubr.f32.mxu0 %v505
        %1646 = vmatmul.mubr.f32.gmra.mxu0 %v504
        %v1647 = vpop.f32.mrf.mxu0
        %v1648 = vadd.f32 0.0, %v1647
        %v1649 = vpop.f32.mrf.mxu0
        %1650 = vmatprep.mubr.f32.mxu0 %v507
        %1651 = vmatmul.mubr.f32.gmra.mxu0 %v506
        %v1652 = vpop.f32.mrf.mxu0
        %v1653 = vadd.f32 0.0, %v1652
        %v1654 = vpop.f32.mrf.mxu0
        %1655 = vmatprep.mubr.f32.mxu0 %v509
        %1656 = vmatmul.mubr.f32.gmra.mxu0 %v508
        %v1657 = vpop.f32.mrf.mxu0
        %v1658 = vadd.f32 0.0, %v1657
        %v1659 = vpop.f32.mrf.mxu0
        %1660 = vmatprep.mubr.f32.mxu0 %v511
        %1661 = vmatmul.mubr.f32.gmra.mxu0 %v510
        %v1662 = vpop.f32.mrf.mxu0
        %v1663 = vadd.f32 0.0, %v1662
        %v1664 = vpop.f32.mrf.mxu0
        %1665 = vmatprep.mubr.f32.mxu0 %v513
        %1666 = vmatmul.mubr.f32.gmra.mxu0 %v512
        %v1667 = vpop.f32.mrf.mxu0
        %v1668 = vadd.f32 0.0, %v1667
        %v1669 = vpop.f32.mrf.mxu0
        %1670 = vmatprep.mubr.f32.mxu0 %v515
        %1671 = vmatmul.mubr.f32.gmra.mxu0 %v514
        %v1672 = vpop.f32.mrf.mxu0
        %v1673 = vadd.f32 0.0, %v1672
        %v1674 = vpop.f32.mrf.mxu0
        %1675 = vmatprep.mubr.f32.mxu0 %v517
        %1676 = vmatmul.mubr.f32.gmra.mxu0 %v516
        %v1677 = vpop.f32.mrf.mxu0
        %v1678 = vadd.f32 0.0, %v1677
        %v1679 = vpop.f32.mrf.mxu0
        %1680 = vmatprep.mubr.f32.mxu0 %v519
        %1681 = vmatmul.mubr.f32.gmra.mxu0 %v518
        %v1682 = vpop.f32.mrf.mxu0
        %v1683 = vadd.f32 0.0, %v1682
        %v1684 = vpop.f32.mrf.mxu0
        %1685 = vmatprep.mubr.f32.mxu0 %v521
        %1686 = vmatmul.mubr.f32.gmra.mxu0 %v520
        %v1687 = vpop.f32.mrf.mxu0
        %v1688 = vadd.f32 0.0, %v1687
        %v1689 = vpop.f32.mrf.mxu0
        %1690 = vdwg.mxu0
        %1723 = vrot.lane.b32.xlu0 %v1434, 32
        %v1724 = vpop.permute.xlu0 %1723
        %1725 = vrot.lane.b32.xlu0 %v1435, 32
        %v1726 = vpop.permute.xlu0 %1725
        %1727 = vrot.lane.b32.xlu0 %v1436, 32
        %v1728 = vpop.permute.xlu0 %1727
        %1729 = vrot.lane.b32.xlu0 %v1437, 32
        %v1730 = vpop.permute.xlu0 %1729
        %1731 = vrot.lane.b32.xlu0 %v1438, 32
        %v1732 = vpop.permute.xlu0 %1731
        %1733 = vrot.lane.b32.xlu0 %v1439, 32
        %v1734 = vpop.permute.xlu0 %1733
        %1735 = vrot.lane.b32.xlu0 %v1440, 32
        %v1736 = vpop.permute.xlu0 %1735
        %1737 = vrot.lane.b32.xlu0 %v1441, 32
        %v1738 = vpop.permute.xlu0 %1737
        %1739 = vrot.lane.b32.xlu0 %v1442, 32
        %v1740 = vpop.permute.xlu0 %1739
        %1741 = vrot.lane.b32.xlu0 %v1443, 32
        %v1742 = vpop.permute.xlu0 %1741
        %1743 = vrot.lane.b32.xlu0 %v1444, 32
        %v1744 = vpop.permute.xlu0 %1743
        %1745 = vrot.lane.b32.xlu0 %v1445, 32
        %v1746 = vpop.permute.xlu0 %1745
        %1747 = vrot.lane.b32.xlu0 %v1446, 32
        %v1748 = vpop.permute.xlu0 %1747
        %1749 = vrot.lane.b32.xlu0 %v1447, 32
        %v1750 = vpop.permute.xlu0 %1749
        %1751 = vrot.lane.b32.xlu0 %v1448, 32
        %v1752 = vpop.permute.xlu0 %1751
        %1753 = vrot.lane.b32.xlu0 %v1449, 32
        %v1754 = vpop.permute.xlu0 %1753
        %1755 = vrot.lane.b32.xlu0 %v1450, 32
        %v1756 = vpop.permute.xlu0 %1755
        %1757 = vrot.lane.b32.xlu0 %v1451, 32
        %v1758 = vpop.permute.xlu0 %1757
        %1759 = vrot.lane.b32.xlu0 %v1452, 32
        %v1760 = vpop.permute.xlu0 %1759
        %1761 = vrot.lane.b32.xlu0 %v1453, 32
        %v1762 = vpop.permute.xlu0 %1761
        %1763 = vrot.lane.b32.xlu0 %v1454, 32
        %v1764 = vpop.permute.xlu0 %1763
        %1765 = vrot.lane.b32.xlu0 %v1455, 32
        %v1766 = vpop.permute.xlu0 %1765
        %1767 = vrot.lane.b32.xlu0 %v1456, 32
        %v1768 = vpop.permute.xlu0 %1767
        %1769 = vrot.lane.b32.xlu0 %v1457, 32
        %v1770 = vpop.permute.xlu0 %1769
        %1771 = vrot.lane.b32.xlu0 %v1458, 32
        %v1772 = vpop.permute.xlu0 %1771
        %1773 = vrot.lane.b32.xlu0 %v1459, 32
        %v1774 = vpop.permute.xlu0 %1773
        %1775 = vrot.lane.b32.xlu0 %v1460, 32
        %v1776 = vpop.permute.xlu0 %1775
        %1777 = vrot.lane.b32.xlu0 %v1461, 32
        %v1778 = vpop.permute.xlu0 %1777
        %1779 = vrot.lane.b32.xlu0 %v1462, 32
        %v1780 = vpop.permute.xlu0 %1779
        %1781 = vrot.lane.b32.xlu0 %v1463, 32
        %v1782 = vpop.permute.xlu0 %1781
        %1783 = vrot.lane.b32.xlu0 %v1464, 32
        %v1784 = vpop.permute.xlu0 %1783
        %1785 = vrot.lane.b32.xlu0 %v1465, 32
        %v1786 = vpop.permute.xlu0 %1785
        %v1819 = vsel %vm1224, %v1533, %v1724
        %v1820 = vsel %vm1224, %v1538, %v1726
        %v1821 = vsel %vm1224, %v1543, %v1728
        %v1822 = vsel %vm1224, %v1548, %v1730
        %v1823 = vsel %vm1224, %v1553, %v1732
        %v1824 = vsel %vm1224, %v1558, %v1734
        %v1825 = vsel %vm1224, %v1563, %v1736
        %v1826 = vsel %vm1224, %v1568, %v1738
        %v1827 = vsel %vm1224, %v1573, %v1740
        %v1828 = vsel %vm1224, %v1578, %v1742
        %v1829 = vsel %vm1224, %v1583, %v1744
        %v1830 = vsel %vm1224, %v1588, %v1746
        %v1831 = vsel %vm1224, %v1593, %v1748
        %v1832 = vsel %vm1224, %v1598, %v1750
        %v1833 = vsel %vm1224, %v1603, %v1752
        %v1834 = vsel %vm1224, %v1608, %v1754
        %v1835 = vsel %vm1224, %v1613, %v1756
        %v1836 = vsel %vm1224, %v1618, %v1758
        %v1837 = vsel %vm1224, %v1623, %v1760
        %v1838 = vsel %vm1224, %v1628, %v1762
        %v1839 = vsel %vm1224, %v1633, %v1764
        %v1840 = vsel %vm1224, %v1638, %v1766
        %v1841 = vsel %vm1224, %v1643, %v1768
        %v1842 = vsel %vm1224, %v1648, %v1770
        %v1843 = vsel %vm1224, %v1653, %v1772
        %v1844 = vsel %vm1224, %v1658, %v1774
        %v1845 = vsel %vm1224, %v1663, %v1776
        %v1846 = vsel %vm1224, %v1668, %v1778
        %v1847 = vsel %vm1224, %v1673, %v1780
        %v1848 = vsel %vm1224, %v1678, %v1782
        %v1849 = vsel %vm1224, %v1683, %v1784
        %v1850 = vsel %vm1224, %v1688, %v1786
        %v1851 = vpack.c.bf16 %v1820, %v1819
        %v1852 = vpack.c.bf16 %v1822, %v1821
        %v1853 = vpack.c.bf16 %v1824, %v1823
        %v1854 = vpack.c.bf16 %v1826, %v1825
        %v1855 = vpack.c.bf16 %v1828, %v1827
        %v1856 = vpack.c.bf16 %v1830, %v1829
        %v1857 = vpack.c.bf16 %v1832, %v1831
        %v1858 = vpack.c.bf16 %v1834, %v1833
        %v1859 = vpack.c.bf16 %v1836, %v1835
        %v1860 = vpack.c.bf16 %v1838, %v1837
        %v1861 = vpack.c.bf16 %v1840, %v1839
        %v1862 = vpack.c.bf16 %v1842, %v1841
        %v1863 = vpack.c.bf16 %v1844, %v1843
        %v1864 = vpack.c.bf16 %v1846, %v1845
        %v1865 = vpack.c.bf16 %v1848, %v1847
        %v1866 = vpack.c.bf16 %v1850, %v1849
        %v1867 = vld [vmem:[%s7] sm:$0xf]
        %v1868 = vld [vmem:[%s7 + $0x4] sm:$0xf]
        %v1869 = vld [vmem:[%s7 + $0x8] sm:$0xf]
        %v1870 = vld [vmem:[%s7 + $0xc] sm:$0xf]
        %v1871 = vld [vmem:[%s7 + $0x10] sm:$0xf]
        %v1872 = vld [vmem:[%s7 + $0x14] sm:$0xf]
        %v1873 = vld [vmem:[%s7 + $0x18] sm:$0xf]
        %v1874 = vld [vmem:[%s7 + $0x1c] sm:$0xf]
        %v1875 = vld [vmem:[%s8] sm:$0x1]
        %v1877 = vlaneseq
        %v1878 = vshrl.u32 %v1877, 7
        %v1879 = vsub.s32 0, %v1878
        %v1880 = vrot.slane %v1875, %v1879
        %v1890 = vunpack.c.l.b16 %v1867
        %v1891 = vunpack.c.l.b16 %v1868
        %v1892 = vunpack.c.l.b16 %v1869
        %v1893 = vunpack.c.l.b16 %v1870
        %v1894 = vunpack.c.l.b16 %v1871
        %v1895 = vunpack.c.l.b16 %v1872
        %v1896 = vunpack.c.l.b16 %v1873
        %v1897 = vunpack.c.l.b16 %v1874
        %v1898 = vpack.c.b16 %v1891, %v1890
        %v1899 = vpack.c.b16 %v1893, %v1892
        %v1900 = vpack.c.b16 %v1895, %v1894
        %v1901 = vpack.c.b16 %v1897, %v1896
        %vm1906 = vcmask 523264
        %v1908 = vsel %vm1906, %v1851, 0
        %v1911 = vsel %vm1906, %v1852, 0
        %v1914 = vsel %vm1906, %v1853, 0
        %v1917 = vsel %vm1906, %v1854, 0
        %v1920 = vsel %vm1906, %v1855, 0
        %v1923 = vsel %vm1906, %v1856, 0
        %v1926 = vsel %vm1906, %v1857, 0
        %v1929 = vsel %vm1906, %v1858, 0
        %v1932 = vsel %vm1906, %v1859, 0
        %v1935 = vsel %vm1906, %v1860, 0
        %v1938 = vsel %vm1906, %v1861, 0
        %v1941 = vsel %vm1906, %v1862, 0
        %v1944 = vsel %vm1906, %v1863, 0
        %v1947 = vsel %vm1906, %v1864, 0
        %v1950 = vsel %vm1906, %v1865, 0
        %v1953 = vsel %vm1906, %v1866, 0
        %1955 = vmatprep.subr.bf16.mxu0 0
        %1956 = vmatpush1.bf16.msra.mxu0 0
        %1957 = vmatprep.subr.bf16.mxu0 0
        %1958 = vmatpush1.bf16.msra.mxu0 0
        %1959 = vmatprep.subr.bf16.mxu0 0
        %1960 = vmatpush1.bf16.msra.mxu0 0
        %1961 = vmatprep.subr.bf16.mxu0 0
        %1962 = vmatpush1.bf16.msra.mxu0 0
        %1963 = vmatprep.subr.bf16.mxu0 0
        %1964 = vmatpush1.bf16.msra.mxu0 %v1901
        %1965 = vmatprep.subr.bf16.mxu0 0
        %1966 = vmatpush1.bf16.msra.mxu0 %v1900
        %1967 = vmatprep.subr.bf16.mxu0 0
        %1968 = vmatpush1.bf16.msra.mxu0 %v1899
        %1969 = vmatprep.subr.bf16.mxu0 0
        %1970 = vmatpush1.bf16.msra.mxu0 %v1898
        %1971 = vmatprep.subr.bf16.mxu0 0
        %1972 = vmatpush2.bf16.msra.mxu0 0
        %1973 = vmatprep.subr.bf16.mxu0 0
        %1974 = vmatpush2.bf16.msra.mxu0 0
        %1975 = vmatprep.subr.bf16.mxu0 0
        %1976 = vmatpush2.bf16.msra.mxu0 0
        %1977 = vmatprep.subr.bf16.mxu0 0
        %1978 = vmatpush2.bf16.msra.mxu0 0
        %1979 = vmatprep.subr.bf16.mxu0 0
        %1980 = vmatpush2.bf16.msra.mxu0 0
        %1981 = vmatprep.subr.bf16.mxu0 0
        %1982 = vmatpush2.bf16.msra.mxu0 0
        %1983 = vmatprep.subr.bf16.mxu0 0
        %1984 = vmatpush2.bf16.msra.mxu0 0
        %1985 = vmatprep.subr.bf16.mxu0 0
        %1986 = vmatpush2.bf16.msra.mxu0 0
        %1987 = vmatprep.mubr.bf16.mxu0 0
        %1988 = vmatmul.mubr.bf16.gmra.mxu0 %v1908
        %v1989 = vpop.f32.mrf.mxu0
        %v1990 = vadd.f32 %v1880, %v1989
        %v1991 = vpop.f32.mrf.mxu0
        %v1992 = vpop.f32.mrf.mxu0
        %v1993 = vadd.f32 %v1880, %v1992
        %v1994 = vpop.f32.mrf.mxu0
        %1995 = vmatprep.mubr.bf16.mxu0 0
        %1996 = vmatmul.mubr.bf16.gmra.mxu0 %v1911
        %v1997 = vpop.f32.mrf.mxu0
        %v1998 = vadd.f32 %v1880, %v1997
        %v1999 = vpop.f32.mrf.mxu0
        %v2000 = vpop.f32.mrf.mxu0
        %v2001 = vadd.f32 %v1880, %v2000
        %v2002 = vpop.f32.mrf.mxu0
        %2003 = vmatprep.mubr.bf16.mxu0 0
        %2004 = vmatmul.mubr.bf16.gmra.mxu0 %v1914
        %v2005 = vpop.f32.mrf.mxu0
        %v2006 = vadd.f32 %v1880, %v2005
        %v2007 = vpop.f32.mrf.mxu0
        %v2008 = vpop.f32.mrf.mxu0
        %v2009 = vadd.f32 %v1880, %v2008
        %v2010 = vpop.f32.mrf.mxu0
        %2011 = vmatprep.mubr.bf16.mxu0 0
        %2012 = vmatmul.mubr.bf16.gmra.mxu0 %v1917
        %v2013 = vpop.f32.mrf.mxu0
        %v2014 = vadd.f32 %v1880, %v2013
        %v2015 = vpop.f32.mrf.mxu0
        %v2016 = vpop.f32.mrf.mxu0
        %v2017 = vadd.f32 %v1880, %v2016
        %v2018 = vpop.f32.mrf.mxu0
        %2019 = vmatprep.mubr.bf16.mxu0 0
        %2020 = vmatmul.mubr.bf16.gmra.mxu0 %v1920
        %v2021 = vpop.f32.mrf.mxu0
        %v2022 = vadd.f32 %v1880, %v2021
        %v2023 = vpop.f32.mrf.mxu0
        %v2024 = vpop.f32.mrf.mxu0
        %v2025 = vadd.f32 %v1880, %v2024
        %v2026 = vpop.f32.mrf.mxu0
        %2027 = vmatprep.mubr.bf16.mxu0 0
        %2028 = vmatmul.mubr.bf16.gmra.mxu0 %v1923
        %v2029 = vpop.f32.mrf.mxu0
        %v2030 = vadd.f32 %v1880, %v2029
        %v2031 = vpop.f32.mrf.mxu0
        %v2032 = vpop.f32.mrf.mxu0
        %v2033 = vadd.f32 %v1880, %v2032
        %v2034 = vpop.f32.mrf.mxu0
        %2035 = vmatprep.mubr.bf16.mxu0 0
        %2036 = vmatmul.mubr.bf16.gmra.mxu0 %v1926
        %v2037 = vpop.f32.mrf.mxu0
        %v2038 = vadd.f32 %v1880, %v2037
        %v2039 = vpop.f32.mrf.mxu0
        %v2040 = vpop.f32.mrf.mxu0
        %v2041 = vadd.f32 %v1880, %v2040
        %v2042 = vpop.f32.mrf.mxu0
        %2043 = vmatprep.mubr.bf16.mxu0 0
        %2044 = vmatmul.mubr.bf16.gmra.mxu0 %v1929
        %v2045 = vpop.f32.mrf.mxu0
        %v2046 = vadd.f32 %v1880, %v2045
        %v2047 = vpop.f32.mrf.mxu0
        %v2048 = vpop.f32.mrf.mxu0
        %v2049 = vadd.f32 %v1880, %v2048
        %v2050 = vpop.f32.mrf.mxu0
        %2051 = vmatprep.mubr.bf16.mxu0 0
        %2052 = vmatmul.mubr.bf16.gmra.mxu0 %v1932
        %v2053 = vpop.f32.mrf.mxu0
        %v2054 = vadd.f32 %v1880, %v2053
        %v2055 = vpop.f32.mrf.mxu0
        %v2056 = vpop.f32.mrf.mxu0
        %v2057 = vadd.f32 %v1880, %v2056
        %v2058 = vpop.f32.mrf.mxu0
        %2059 = vmatprep.mubr.bf16.mxu0 0
        %2060 = vmatmul.mubr.bf16.gmra.mxu0 %v1935
        %v2061 = vpop.f32.mrf.mxu0
        %v2062 = vadd.f32 %v1880, %v2061
        %v2063 = vpop.f32.mrf.mxu0
        %v2064 = vpop.f32.mrf.mxu0
        %v2065 = vadd.f32 %v1880, %v2064
        %v2066 = vpop.f32.mrf.mxu0
        %2067 = vmatprep.mubr.bf16.mxu0 0
        %2068 = vmatmul.mubr.bf16.gmra.mxu0 %v1938
        %v2069 = vpop.f32.mrf.mxu0
        %v2070 = vadd.f32 %v1880, %v2069
        %v2071 = vpop.f32.mrf.mxu0
        %v2072 = vpop.f32.mrf.mxu0
        %v2073 = vadd.f32 %v1880, %v2072
        %v2074 = vpop.f32.mrf.mxu0
        %2075 = vmatprep.mubr.bf16.mxu0 0
        %2076 = vmatmul.mubr.bf16.gmra.mxu0 %v1941
        %v2077 = vpop.f32.mrf.mxu0
        %v2078 = vadd.f32 %v1880, %v2077
        %v2079 = vpop.f32.mrf.mxu0
        %v2080 = vpop.f32.mrf.mxu0
        %v2081 = vadd.f32 %v1880, %v2080
        %v2082 = vpop.f32.mrf.mxu0
        %2083 = vmatprep.mubr.bf16.mxu0 0
        %2084 = vmatmul.mubr.bf16.gmra.mxu0 %v1944
        %v2085 = vpop.f32.mrf.mxu0
        %v2086 = vadd.f32 %v1880, %v2085
        %v2087 = vpop.f32.mrf.mxu0
        %v2088 = vpop.f32.mrf.mxu0
        %v2089 = vadd.f32 %v1880, %v2088
        %v2090 = vpop.f32.mrf.mxu0
        %2091 = vmatprep.mubr.bf16.mxu0 0
        %2092 = vmatmul.mubr.bf16.gmra.mxu0 %v1947
        %v2093 = vpop.f32.mrf.mxu0
        %v2094 = vadd.f32 %v1880, %v2093
        %v2095 = vpop.f32.mrf.mxu0
        %v2096 = vpop.f32.mrf.mxu0
        %v2097 = vadd.f32 %v1880, %v2096
        %v2098 = vpop.f32.mrf.mxu0
        %2099 = vmatprep.mubr.bf16.mxu0 0
        %2100 = vmatmul.mubr.bf16.gmra.mxu0 %v1950
        %v2101 = vpop.f32.mrf.mxu0
        %v2102 = vadd.f32 %v1880, %v2101
        %v2103 = vpop.f32.mrf.mxu0
        %v2104 = vpop.f32.mrf.mxu0
        %v2105 = vadd.f32 %v1880, %v2104
        %v2106 = vpop.f32.mrf.mxu0
        %2107 = vmatprep.mubr.bf16.mxu0 0
        %2108 = vmatmul.mubr.bf16.gmra.mxu0 %v1953
        %v2109 = vpop.f32.mrf.mxu0
        %v2110 = vadd.f32 %v1880, %v2109
        %v2111 = vpop.f32.mrf.mxu0
        %v2112 = vpop.f32.mrf.mxu0
        %v2113 = vadd.f32 %v1880, %v2112
        %v2114 = vpop.f32.mrf.mxu0
        %2115 = vdwg.mxu0
        %v2116 = vmax.f32 %v1990, 0.0
        %v2117 = vmax.f32 %v1993, 0.0
        %v2118 = vmax.f32 %v1998, 0.0
        %v2119 = vmax.f32 %v2001, 0.0
        %v2120 = vmax.f32 %v2006, 0.0
        %v2121 = vmax.f32 %v2009, 0.0
        %v2122 = vmax.f32 %v2014, 0.0
        %v2123 = vmax.f32 %v2017, 0.0
        %v2124 = vmax.f32 %v2022, 0.0
        %v2125 = vmax.f32 %v2025, 0.0
        %v2126 = vmax.f32 %v2030, 0.0
        %v2127 = vmax.f32 %v2033, 0.0
        %v2128 = vmax.f32 %v2038, 0.0
        %v2129 = vmax.f32 %v2041, 0.0
        %v2130 = vmax.f32 %v2046, 0.0
        %v2131 = vmax.f32 %v2049, 0.0
        %v2132 = vmax.f32 %v2054, 0.0
        %v2133 = vmax.f32 %v2057, 0.0
        %v2134 = vmax.f32 %v2062, 0.0
        %v2135 = vmax.f32 %v2065, 0.0
        %v2136 = vmax.f32 %v2070, 0.0
        %v2137 = vmax.f32 %v2073, 0.0
        %v2138 = vmax.f32 %v2078, 0.0
        %v2139 = vmax.f32 %v2081, 0.0
        %v2140 = vmax.f32 %v2086, 0.0
        %v2141 = vmax.f32 %v2089, 0.0
        %v2142 = vmax.f32 %v2094, 0.0
        %v2143 = vmax.f32 %v2097, 0.0
        %v2144 = vmax.f32 %v2102, 0.0
        %v2145 = vmax.f32 %v2105, 0.0
        %v2146 = vmax.f32 %v2110, 0.0
        %v2147 = vmax.f32 %v2113, 0.0
        %2148 = vmatprep.subr.mxu0 0.0
        %2149 = vmatpush1.msra.mxu0 %v2131
        %2150 = vmatprep.subr.mxu0 0.0
        %2151 = vmatpush1.msra.mxu0 %v2130
        %2152 = vmatprep.subr.mxu0 0.0
        %2153 = vmatpush1.msra.mxu0 %v2129
        %2154 = vmatprep.subr.mxu0 0.0
        %2155 = vmatpush1.msra.mxu0 %v2128
        %2156 = vmatprep.subr.mxu0 0.0
        %2157 = vmatpush1.msra.mxu0 %v2127
        %2158 = vmatprep.subr.mxu0 0.0
        %2159 = vmatpush1.msra.mxu0 %v2126
        %2160 = vmatprep.subr.mxu0 0.0
        %2161 = vmatpush1.msra.mxu0 %v2125
        %2162 = vmatprep.subr.mxu0 0.0
        %2163 = vmatpush1.msra.mxu0 %v2124
        %2164 = vmatprep.subr.mxu0 0.0
        %2165 = vmatpush1.msra.mxu0 %v2123
        %2166 = vmatprep.subr.mxu0 0.0
        %2167 = vmatpush1.msra.mxu0 %v2122
        %2168 = vmatprep.subr.mxu0 0.0
        %2169 = vmatpush1.msra.mxu0 %v2121
        %2170 = vmatprep.subr.mxu0 0.0
        %2171 = vmatpush1.msra.mxu0 %v2120
        %2172 = vmatprep.subr.mxu0 0.0
        %2173 = vmatpush1.msra.mxu0 %v2119
        %2174 = vmatprep.subr.mxu0 0.0
        %2175 = vmatpush1.msra.mxu0 %v2118
        %2176 = vmatprep.subr.mxu0 0.0
        %2177 = vmatpush1.msra.mxu0 %v2117
        %2178 = vmatprep.subr.mxu0 0.0
        %2179 = vmatpush1.msra.mxu0 %v2116
        %2180 = vmatprep.subr.mxu0 0.0
        %2181 = vmatpush2.msra.mxu0 %v2147
        %2182 = vmatprep.subr.mxu0 0.0
        %2183 = vmatpush2.msra.mxu0 %v2146
        %2184 = vmatprep.subr.mxu0 0.0
        %2185 = vmatpush2.msra.mxu0 %v2145
        %2186 = vmatprep.subr.mxu0 0.0
        %2187 = vmatpush2.msra.mxu0 %v2144
        %2188 = vmatprep.subr.mxu0 0.0
        %2189 = vmatpush2.msra.mxu0 %v2143
        %2190 = vmatprep.subr.mxu0 0.0
        %2191 = vmatpush2.msra.mxu0 %v2142
        %2192 = vmatprep.subr.mxu0 0.0
        %2193 = vmatpush2.msra.mxu0 %v2141
        %2194 = vmatprep.subr.mxu0 0.0
        %2195 = vmatpush2.msra.mxu0 %v2140
        %2196 = vmatprep.subr.mxu0 0.0
        %2197 = vmatpush2.msra.mxu0 %v2139
        %2198 = vmatprep.subr.mxu0 0.0
        %2199 = vmatpush2.msra.mxu0 %v2138
        %2200 = vmatprep.subr.mxu0 0.0
        %2201 = vmatpush2.msra.mxu0 %v2137
        %2202 = vmatprep.subr.mxu0 0.0
        %2203 = vmatpush2.msra.mxu0 %v2136
        %2204 = vmatprep.subr.mxu0 0.0
        %2205 = vmatpush2.msra.mxu0 %v2135
        %2206 = vmatprep.subr.mxu0 0.0
        %2207 = vmatpush2.msra.mxu0 %v2134
        %2208 = vmatprep.subr.mxu0 0.0
        %2209 = vmatpush2.msra.mxu0 %v2133
        %2210 = vmatprep.subr.mxu0 0.0
        %2211 = vmatpush2.msra.mxu0 %v2132
        %2212 = vmatprep.mubr.f32.mxu0 %v523
        %2213 = vmatmul.mubr.f32.gmra.mxu0 %v522
        %v2214 = vpop.f32.mrf.mxu0
        %v2215 = vadd.f32 0.0, %v2214
        %v2216 = vpop.f32.mrf.mxu0
        %2217 = vmatprep.mubr.f32.mxu0 %v525
        %2218 = vmatmul.mubr.f32.gmra.mxu0 %v524
        %v2219 = vpop.f32.mrf.mxu0
        %v2220 = vadd.f32 0.0, %v2219
        %v2221 = vpop.f32.mrf.mxu0
        %2222 = vdwg.mxu0
        %v2223 = vld [vmem:[%s9] sm:$0xff]
        %v2224 = vld [vmem:[%s9 + $0x8] sm:$0xff]
        %v2225 = vld [vmem:[%s9 + $0x10] sm:$0xff]
        %v2226 = vld [vmem:[%s9 + $0x18] sm:$0xff]
        %v2227 = vld [vmem:[%s10] sm:$0x1]
        %v2229 = vlaneseq
        %v2230 = vshrl.u32 %v2229, 7
        %v2231 = vsub.s32 0, %v2230
        %v2232 = vrot.slane %v2227, %v2231
        %v2235 = vsel %vm1224, %v2215, 0
        %v2238 = vsel %vm1224, %v2220, 0
        %2240 = vmatprep.subr.mxu0 0.0
        %2241 = vmatpush1.msra.mxu0 0.0
        %2242 = vmatprep.subr.mxu0 0.0
        %2243 = vmatpush1.msra.mxu0 0.0
        %2244 = vmatprep.subr.mxu0 0.0
        %2245 = vmatpush1.msra.mxu0 0.0
        %2246 = vmatprep.subr.mxu0 0.0
        %2247 = vmatpush1.msra.mxu0 0.0
        %2248 = vmatprep.subr.mxu0 0.0
        %2249 = vmatpush1.msra.mxu0 0.0
        %2250 = vmatprep.subr.mxu0 0.0
        %2251 = vmatpush1.msra.mxu0 0.0
        %2252 = vmatprep.subr.mxu0 0.0
        %2253 = vmatpush1.msra.mxu0 0.0
        %2254 = vmatprep.subr.mxu0 0.0
        %2255 = vmatpush1.msra.mxu0 0.0
        %2256 = vmatprep.subr.mxu0 0.0
        %2257 = vmatpush1.msra.mxu0 0.0
        %2258 = vmatprep.subr.mxu0 0.0
        %2259 = vmatpush1.msra.mxu0 0.0
        %2260 = vmatprep.subr.mxu0 0.0
        %2261 = vmatpush1.msra.mxu0 0.0
        %2262 = vmatprep.subr.mxu0 0.0
        %2263 = vmatpush1.msra.mxu0 0.0
        %2264 = vmatprep.subr.mxu0 0.0
        %2265 = vmatpush1.msra.mxu0 %v2226
        %2266 = vmatprep.subr.mxu0 0.0
        %2267 = vmatpush1.msra.mxu0 %v2225
        %2268 = vmatprep.subr.mxu0 0.0
        %2269 = vmatpush1.msra.mxu0 %v2224
        %2270 = vmatprep.subr.mxu0 0.0
        %2271 = vmatpush1.msra.mxu0 %v2223
        %2272 = vmatprep.subr.mxu0 0.0
        %2273 = vmatpush2.msra.mxu0 0.0
        %2274 = vmatprep.subr.mxu0 0.0
        %2275 = vmatpush2.msra.mxu0 0.0
        %2276 = vmatprep.subr.mxu0 0.0
        %2277 = vmatpush2.msra.mxu0 0.0
        %2278 = vmatprep.subr.mxu0 0.0
        %2279 = vmatpush2.msra.mxu0 0.0
        %2280 = vmatprep.subr.mxu0 0.0
        %2281 = vmatpush2.msra.mxu0 0.0
        %2282 = vmatprep.subr.mxu0 0.0
        %2283 = vmatpush2.msra.mxu0 0.0
        %2284 = vmatprep.subr.mxu0 0.0
        %2285 = vmatpush2.msra.mxu0 0.0
        %2286 = vmatprep.subr.mxu0 0.0
        %2287 = vmatpush2.msra.mxu0 0.0
        %2288 = vmatprep.subr.mxu0 0.0
        %2289 = vmatpush2.msra.mxu0 0.0
        %2290 = vmatprep.subr.mxu0 0.0
        %2291 = vmatpush2.msra.mxu0 0.0
        %2292 = vmatprep.subr.mxu0 0.0
        %2293 = vmatpush2.msra.mxu0 0.0
        %2294 = vmatprep.subr.mxu0 0.0
        %2295 = vmatpush2.msra.mxu0 0.0
        %2296 = vmatprep.subr.mxu0 0.0
        %2297 = vmatpush2.msra.mxu0 0.0
        %2298 = vmatprep.subr.mxu0 0.0
        %2299 = vmatpush2.msra.mxu0 0.0
        %2300 = vmatprep.subr.mxu0 0.0
        %2301 = vmatpush2.msra.mxu0 0.0
        %2302 = vmatprep.subr.mxu0 0.0
        %2303 = vmatpush2.msra.mxu0 0.0
        %2304 = vmatprep.mubr.f32.mxu0 0.0
        %2305 = vmatmul.mubr.f32.gmra.mxu0 %v2235
        %v2306 = vpop.f32.mrf.mxu0
        %v2307 = vadd.f32 %v2232, %v2306
        %v2308 = vpop.f32.mrf.mxu0
        %2309 = vmatprep.mubr.f32.mxu0 0.0
        %2310 = vmatmul.mubr.f32.gmra.mxu0 %v2238
        %v2311 = vpop.f32.mrf.mxu0
        %v2312 = vadd.f32 %v2232, %v2311
        %v2313 = vpop.f32.mrf.mxu0
        %2314 = vdwg.mxu0
        %2315 = vst [vmem:[%s419] sm:$0xff] %v2307
        %2316 = vst [vmem:[%s419 + $0x8] sm:$0xff] %v2312
        %s2317 = sand.u32 %s277, 1
        %s2318 = scalar_lea.sflag [#allocation4], %s2317
        %s2319 = sand.u32 %s277, 1
        %s2320 = smul.addr %s2319, 16
        %s2321 = scalar_lea.vmem [#allocation5], %s2320
        // Predicated region
        $region69: #{tpu_custom_call.1} parent=63 // pred_check
          %p2322 = pneg %p287
        $region70: #{tpu_custom_call.1} parent=63 // pred_check_branch
          %2324 = sbr.rel (%p2322) target = $region72
        $region71: #{tpu_custom_call.1} parent=63 // pred_region
          %s2326 = ssub.s32 256, 256
          %2327 = vsyncadd %s2318, %s2326
          %s2328 = smul.addr %s28, 2
          %s2329 = smul.addr %s2328, 128
          %s2330 = scalar_lea.hbm %s11, %s2329
          %s2331 = sshll.u32 %s2321, 4
          %s2332 = int_to_ptr.vmem [resolvable:$true] %s2331
          %2337 = dma.vmem_to_hbm [thread:$0]  %s2332, 256, %s2330, %s2318, 128, 128, 8
        $region72: #{tpu_custom_call.1} parent=63 // pred_fallthru
          _
      $region64: #{tpu_custom_call.1} parent=5 // pred_fallthru
        _
      %p2338 = scmp.le.s32.totalorder 2, %s23
      // Predicated region
      $region73: #{tpu_custom_call.1} parent=5 // pred_check
        %p2339 = pneg %p2338
      $region74: #{tpu_custom_call.1} parent=5 // pred_check_branch
        %2341 = sbr.rel (%p2339) target = $region76
      $region75: #{tpu_custom_call.1} parent=5 // pred_region
        %s2342 = ssub.s32 %s23, 2
        // Predicated region
        $region77: #{tpu_custom_call.1} parent=75 // pred_check
          %p2343 = pneg %p293
        $region78: #{tpu_custom_call.1} parent=75 // pred_check_branch
          %2345 = sbr.rel (%p2343) target = $region80
        $region79: #{tpu_custom_call.1} parent=75 // pred_region
          %s2346 = sand.u32 %s278, 1
          %s2347 = scalar_lea.sflag [#allocation4], %s2346
          %s2348 = sand.u32 %s278, 1
          %s2349 = smul.addr %s2348, 16
          %s2350 = scalar_lea.vmem [#allocation5], %s2349
          %2351 = dma.done %s2347, 256
        $region80: #{tpu_custom_call.1} parent=75 // pred_fallthru
          _
      $region76: #{tpu_custom_call.1} parent=5 // pred_fallthru
        _
    $region6: #{tpu_custom_call.1} parent=1 // loop_footer
      %s27 = sadd.s32 1, %s23
    $region7: #{tpu_custom_call.1} parent=1 // loop_footer_branch
      %22 = sbr.rel target = $region3
    $region8: #{tpu_custom_call.1} parent=1 // loop_exit
      _
    %2352 = vsyncpa [#allocation3], 1
    %s2353 = scalar_lea.sflag [#allocation3], 1
    %2354 = vsyncpa %s2353, 1
    %2355 = vsyncpa [#allocation4], 1
    %s2356 = scalar_lea.sflag [#allocation4], 1
    %2357 = vsyncpa %s2356, 1

</llo_original>
